<compile_context>
chip_gen: v5e
topology: v5e:2x2
jax: 0.10.0
libtpu: 0.0.40
codegen_flags: <defaults>
</compile_context>

<pallas_src>
import functools
import math

import jax
import jax.numpy as jnp
from jax.experimental import pallas as pl
from jax.experimental.pallas import tpu as pltpu


def _round_up(x, m):
    return (x + m - 1) // m * m


# ----------------------------------------------------------------------------
# Kernel 1: stem conv (im2col matmul) + folded BatchNorm2d + SiLU + fused
# global average pool.  grid = (B, n_m_tiles); the M (= Ho*Wo) axis is a
# reduction into a per-image VMEM accumulator, so the big activation map never
# touches HBM -- only the (1, C_PAD) pooled vector per image is written.
# ----------------------------------------------------------------------------
def stem_gap_kernel(patches_ref, w_ref, scale_ref, shift_ref, pooled_ref,
                    acc_ref, *, hw, tile_m):
    t = pl.program_id(1)

    @pl.when(t == 0)
    def _init():
        acc_ref[...] = jnp.zeros_like(acc_ref)

    # bf16 x bf16 matmul on the MXU, f32 accumulation.
    acc = jnp.dot(patches_ref[...], w_ref[...],
                  preferred_element_type=jnp.float32)         # (TILE_M, C_PAD)
    y = acc * scale_ref[...] + shift_ref[...]                  # folded BatchNorm2d
    act = y * jax.nn.sigmoid(y)                                # SiLU (f32, VPU/EUP)

    if hw % tile_m != 0:  # static: mask rows that only exist due to M padding
        row = t * tile_m + jax.lax.broadcasted_iota(jnp.int32, (tile_m, 1), 0)
        act = jnp.where(row < hw, act, 0.0)

    acc_ref[...] += jnp.sum(act, axis=0, keepdims=True)        # partial GAP sum

    @pl.when(t == pl.num_programs(1) - 1)
    def _finalize():
        pooled_ref[...] = acc_ref[...] * (1.0 / hw)            # mean over Ho*Wo


# ----------------------------------------------------------------------------
# Kernel 2: classifier Linear + BatchNorm1d (eval stats) + exact GELU +
# pose Linear.  Tiny (B x 1024-ish), single ungridded call in VMEM.
# ----------------------------------------------------------------------------
def head_kernel(pooled_ref, w_cls_ref, b_cls_ref, bn_scale_ref, bn_shift_ref,
                w_pose_ref, b_pose_ref, out_ref):
    pooled = pooled_ref[...].astype(jnp.bfloat16)              # (B, C_PAD)
    logits = jnp.dot(pooled, w_cls_ref[...],
                     preferred_element_type=jnp.float32) + b_cls_ref[...]
    y = logits * bn_scale_ref[...] + bn_shift_ref[...]         # BatchNorm1d folded
    # exact (erf-based) GELU, matching torch.nn.functional.gelu default
    g = 0.5 * y * (1.0 + jax.lax.erf(y * (1.0 / math.sqrt(2.0))))
    out_ref[...] = jnp.dot(g, w_pose_ref[...],
                           preferred_element_type=jnp.float32) + b_pose_ref[...]


# ----------------------------------------------------------------------------
# Glue: im2col patch extraction (pure slicing/reshape, stays in plain JAX).
# TODO(synk): folding the 9-tap extraction into the Pallas pipeline (row-band
# BlockSpecs + in-VMEM strided taps) would remove this HBM materialization.
# ----------------------------------------------------------------------------
def im2col(x_nhwc, k=3, s=2, p=1):
    B, H, W, C = x_nhwc.shape
    xp = jnp.pad(x_nhwc, ((0, 0), (p, p), (p, p), (0, 0)))
    Ho = (H + 2 * p - k) // s + 1
    Wo = (W + 2 * p - k) // s + 1
    taps = [xp[:, di:di + s * Ho:s, dj:dj + s * Wo:s, :]
            for di in range(k) for dj in range(k)]
    patches = jnp.stack(taps, axis=-2)                         # (B, Ho, Wo, k*k, C)
    return patches.reshape(B, Ho * Wo, k * k * C), (Ho, Wo)


# ----------------------------------------------------------------------------
# Parameter construction (deterministic, synthetic) -- channel/feature axes are
# zero-padded to multiples of 128 for lane-dense tiles; padded channels carry
# exact zeros end-to-end so the 7 pose outputs are unchanged.
# ----------------------------------------------------------------------------
def make_params(key, cin=3, c_stem=64, n_feat=1000, n_pose=7, k=3, eps=1e-5):
    ks = jax.random.split(key, 10)
    c_pad = _round_up(c_stem, 128)
    f_pad = _round_up(n_feat, 128)

    # stem conv (Cout, Cin, kh, kw) -> (kh*kw*Cin, Cout), no bias (EfficientNet)
    w_conv = 0.1 * jax.random.normal(ks[0], (c_stem, cin, k, k), jnp.float32)
    stem_w = jnp.transpose(w_conv, (2, 3, 1, 0)).reshape(k * k * cin, c_stem)

    # BatchNorm2d(c_stem) folded into per-channel scale/shift
    g2 = 1.0 + 0.1 * jax.random.normal(ks[1], (c_stem,), jnp.float32)
    b2 = 0.1 * jax.random.normal(ks[2], (c_stem,), jnp.float32)
    m2 = 0.1 * jax.random.normal(ks[3], (c_stem,), jnp.float32)
    v2 = jnp.abs(1.0 + 0.1 * jax.random.normal(ks[4], (c_stem,), jnp.float32))
    inv2 = g2 / jnp.sqrt(v2 + eps)
    stem_scale = inv2.reshape(1, c_stem)
    stem_shift = (b2 - m2 * inv2).reshape(1, c_stem)

    # backbone classifier Linear(c_stem -> n_feat)
    w_cls = 0.05 * jax.random.normal(ks[5], (c_stem, n_feat), jnp.float32)
    b_cls = 0.05 * jax.random.normal(ks[6], (1, n_feat), jnp.float32)

    # BatchNorm1d(n_feat) folded (eval-mode running statistics)
    g1 = 1.0 + 0.1 * jax.random.normal(ks[7], (n_feat,), jnp.float32)
    b1 = 0.1 * jax.random.normal(ks[8], (n_feat,), jnp.float32)
    m1 = jnp.zeros((n_feat,), jnp.float32)
    v1 = jnp.ones((n_feat,), jnp.float32)
    inv1 = g1 / jnp.sqrt(v1 + eps)
    bn_scale = inv1.reshape(1, n_feat)
    bn_shift = (b1 - m1 * inv1).reshape(1, n_feat)

    # pose head Linear(n_feat -> n_pose)
    kp, kb = jax.random.split(ks[9])
    w_pose = 0.02 * jax.random.normal(kp, (n_feat, n_pose), jnp.float32)
    b_pose = 0.02 * jax.random.normal(kb, (1, n_pose), jnp.float32)

    dc, df = c_pad - c_stem, f_pad - n_feat
    return dict(
        stem_w=jnp.pad(stem_w, ((0, 0), (0, dc))),
        stem_scale=jnp.pad(stem_scale, ((0, 0), (0, dc))),
        stem_shift=jnp.pad(stem_shift, ((0, 0), (0, dc))),
        w_cls=jnp.pad(w_cls, ((0, dc), (0, df))),
        b_cls=jnp.pad(b_cls, ((0, 0), (0, df))),
        bn_scale=jnp.pad(bn_scale, ((0, 0), (0, df))),
        bn_shift=jnp.pad(bn_shift, ((0, 0), (0, df))),
        w_pose=jnp.pad(w_pose, ((0, df), (0, 0))),
        b_pose=b_pose,
    )


# ----------------------------------------------------------------------------
# Forward wrapper
# ----------------------------------------------------------------------------
@jax.jit
def pose_efficientnet_forward(image_nchw, params):
    # NCHW (PyTorch) -> NHWC; bf16 at the MXU boundary (accumulation is f32).
    x = jnp.transpose(image_nchw, (0, 2, 3, 1)).astype(jnp.bfloat16)

    patches, (Ho, Wo) = im2col(x, k=3, s=2, p=1)
    B, HW, K = patches.shape

    C_PAD = params["stem_w"].shape[-1]          # lane-dense stem width (128)
    stem_w = params["stem_w"].astype(jnp.bfloat16)

    # M-tiling: big tiles (1024-4096 rows) at real sizes, clamped for small HW.
    TILE_M = min(2048, _round_up(HW, 256))
    HW_pad = _round_up(HW, TILE_M)
    n_tiles = HW_pad // TILE_M
    if HW_pad != HW:
        patches = jnp.pad(patches, ((0, 0), (0, HW_pad - HW), (0, 0)))

    cost = pl.CostEstimate(
        flops=2 * B * HW_pad * K * C_PAD + 6 * B * HW_pad * C_PAD,
        transcendentals=B * HW_pad * C_PAD,
        bytes_accessed=(patches.size * 2 + stem_w.size * 2
                        + 2 * C_PAD * 4 + B * C_PAD * 4),
    )

    # Kernel 1: gridded stem conv + BN2d + SiLU + fused global average pool.
    pooled = pl.pallas_call(
        functools.partial(stem_gap_kernel, hw=HW, tile_m=TILE_M),
        out_shape=jax.ShapeDtypeStruct((B, 1, C_PAD), jnp.float32),
        grid=(B, n_tiles),
        in_specs=[
            pl.BlockSpec((None, TILE_M, K), lambda b, t: (b, t, 0)),   # patches
            pl.BlockSpec((K, C_PAD), lambda b, t: (0, 0)),             # stem_w
            pl.BlockSpec((1, C_PAD), lambda b, t: (0, 0)),             # bn scale
            pl.BlockSpec((1, C_PAD), lambda b, t: (0, 0)),             # bn shift
        ],
        out_specs=pl.BlockSpec((None, 1, C_PAD), lambda b, t: (b, 0, 0)),
        scratch_shapes=[pltpu.VMEM((1, C_PAD), jnp.float32)],
        compiler_params=pltpu.CompilerParams(
            dimension_semantics=("parallel", "arbitrary"),
            vmem_limit_bytes=32 * 1024 * 1024),
        cost_estimate=cost,
    )(patches, stem_w, params["stem_scale"], params["stem_shift"])

    pooled = pooled.reshape(B, C_PAD)

    # Kernel 2: classifier Linear + BatchNorm1d + exact GELU + pose Linear.
    _VMEM = pl.BlockSpec(memory_space=pltpu.MemorySpace.VMEM)
    pose = pl.pallas_call(
        head_kernel,
        out_shape=jax.ShapeDtypeStruct((B, 7), jnp.float32),
        in_specs=[_VMEM] * 7,
        out_specs=_VMEM,
    )(pooled, params["w_cls"].astype(jnp.bfloat16), params["b_cls"],
      params["bn_scale"], params["bn_shift"], params["w_pose"],
      params["b_pose"])

    return pose


# ----------------------------------------------------------------------------
if __name__ == "__main__":
    key = jax.random.PRNGKey(0)
    k_img, k_par = jax.random.split(key)

    # Small, shape-consistent input: batch=2, 3 channels, 32x32 image (NCHW).
    image = jax.random.normal(k_img, (2, 3, 32, 32), dtype=jnp.float32)
    params = make_params(k_par)

    pose = pose_efficientnet_forward(image, params)
    pose = jax.block_until_ready(pose)

    assert pose.shape == (2, 7) and pose.dtype == jnp.float32
    print("KERNEL_OK")
</pallas_src>

<mosaic_0001>
module attributes {stable_mosaic.version = 11 : i64} {
  func.func @head_kernel(%arg0: memref<2x128xf32, #tpu.memory_space<vmem>>, %arg1: memref<128x1024xbf16, #tpu.memory_space<vmem>>, %arg2: memref<1x1024xf32, #tpu.memory_space<vmem>>, %arg3: memref<1x1024xf32, #tpu.memory_space<vmem>>, %arg4: memref<1x1024xf32, #tpu.memory_space<vmem>>, %arg5: memref<1024x7xf32, #tpu.memory_space<vmem>>, %arg6: memref<1x7xf32, #tpu.memory_space<vmem>>, %arg7: memref<2x7xf32, #tpu.memory_space<vmem>>) attributes {dimension_semantics = [], scalar_prefetch = 0 : i64, scratch_operands = 0 : i64, tpu.core_type = #tpu.core_type<tc>} {
    %c0 = arith.constant 0 : index
    %c0_0 = arith.constant 0 : index
    %0 = vector.load %arg0[%c0, %c0_0] : memref<2x128xf32, #tpu.memory_space<vmem>>, vector<2x128xf32>
    %1 = arith.truncf %0 : vector<2x128xf32> to vector<2x128xbf16>
    %c0_1 = arith.constant 0 : index
    %c0_2 = arith.constant 0 : index
    %2 = vector.load %arg1[%c0_1, %c0_2] : memref<128x1024xbf16, #tpu.memory_space<vmem>>, vector<128x1024xbf16>
    %cst = arith.constant dense<0.000000e+00> : vector<2x1024xf32>
    %3 = tpu.matmul %1, %2, %cst {dimension_numbers = #tpu.dot_dimension_numbers<[1], [0], [0], [1], [0, 0, 1, 1], [], []>} : vector<2x128xbf16>, vector<128x1024xbf16>, vector<2x1024xf32> -> vector<2x1024xf32>
    %c0_3 = arith.constant 0 : index
    %c0_4 = arith.constant 0 : index
    %4 = vector.load %arg2[%c0_3, %c0_4] : memref<1x1024xf32, #tpu.memory_space<vmem>>, vector<1x1024xf32>
    %5 = vector.broadcast %4 : vector<1x1024xf32> to vector<2x1024xf32>
    %6 = arith.addf %3, %5 : vector<2x1024xf32>
    %c0_5 = arith.constant 0 : index
    %c0_6 = arith.constant 0 : index
    %7 = vector.load %arg3[%c0_5, %c0_6] : memref<1x1024xf32, #tpu.memory_space<vmem>>, vector<1x1024xf32>
    %8 = vector.broadcast %7 : vector<1x1024xf32> to vector<2x1024xf32>
    %9 = arith.mulf %6, %8 : vector<2x1024xf32>
    %c0_7 = arith.constant 0 : index
    %c0_8 = arith.constant 0 : index
    %10 = vector.load %arg4[%c0_7, %c0_8] : memref<1x1024xf32, #tpu.memory_space<vmem>>, vector<1x1024xf32>
    %11 = vector.broadcast %10 : vector<1x1024xf32> to vector<2x1024xf32>
    %12 = arith.addf %9, %11 : vector<2x1024xf32>
    %cst_9 = arith.constant 5.000000e-01 : f32
    %13 = vector.broadcast %cst_9 : f32 to vector<2x1024xf32>
    %14 = arith.mulf %13, %12 : vector<2x1024xf32>
    %cst_10 = arith.constant 0.707106769 : f32
    %15 = vector.broadcast %cst_10 : f32 to vector<2x1024xf32>
    %16 = arith.mulf %12, %15 : vector<2x1024xf32>
    %17 = math.erf %16 : vector<2x1024xf32>
    %cst_11 = arith.constant 1.000000e+00 : f32
    %18 = vector.broadcast %cst_11 : f32 to vector<2x1024xf32>
    %19 = arith.addf %18, %17 : vector<2x1024xf32>
    %20 = arith.mulf %14, %19 : vector<2x1024xf32>
    %c0_12 = arith.constant 0 : index
    %c0_13 = arith.constant 0 : index
    %21 = vector.load %arg5[%c0_12, %c0_13] : memref<1024x7xf32, #tpu.memory_space<vmem>>, vector<1024x7xf32>
    %cst_14 = arith.constant dense<0.000000e+00> : vector<2x7xf32>
    %22 = tpu.matmul %20, %21, %cst_14 {dimension_numbers = #tpu.dot_dimension_numbers<[1], [0], [0], [1], [0, 0, 1, 1], [], []>} : vector<2x1024xf32>, vector<1024x7xf32>, vector<2x7xf32> -> vector<2x7xf32>
    %c0_15 = arith.constant 0 : index
    %c0_16 = arith.constant 0 : index
    %23 = vector.load %arg6[%c0_15, %c0_16] : memref<1x7xf32, #tpu.memory_space<vmem>>, vector<1x7xf32>
    %24 = vector.broadcast %23 : vector<1x7xf32> to vector<2x7xf32>
    %25 = arith.addf %22, %24 : vector<2x7xf32>
    %c0_17 = arith.constant 0 : index
    %c0_18 = arith.constant 0 : index
    %26 = vector.load %arg7[%c0_17, %c0_18] : memref<2x7xf32, #tpu.memory_space<vmem>>, vector<2x7xf32>
    tpu.vector_store %arg7[%c0_17, %c0_18], %25 {strides = array<i32>} : memref<2x7xf32, #tpu.memory_space<vmem>>, vector<2x7xf32>,
    return
  }
}

module attributes {stable_mosaic.version = 11 : i64} {
  func.func @stem_gap_kernel(%arg0: i32, %arg1: i32, %arg2: memref<1x256x27xbf16, #tpu.memory_space<vmem>>, %arg3: memref<27x128xbf16, #tpu.memory_space<vmem>>, %arg4: memref<1x128xf32, #tpu.memory_space<vmem>>, %arg5: memref<1x128xf32, #tpu.memory_space<vmem>>, %arg6: memref<1x1x128xf32, #tpu.memory_space<vmem>>, %arg7: memref<1x128xf32, #tpu.memory_space<vmem>>) attributes {dimension_semantics = [#tpu.dimension_semantics<parallel>, #tpu.dimension_semantics<arbitrary>], iteration_bounds = array<i64: 2, 1>, scalar_prefetch = 0 : i64, scratch_operands = 1 : i64, tpu.core_type = #tpu.core_type<tc>, window_params = [{transform_indices = @transform_0, window_bounds = array<i64: 1, 256, 27>}, {pipeline_mode = #tpu.pipeline_mode<synchronous>, transform_indices = @transform_1, window_bounds = array<i64: 27, 128>}, {pipeline_mode = #tpu.pipeline_mode<synchronous>, transform_indices = @transform_2, window_bounds = array<i64: 1, 128>}, {pipeline_mode = #tpu.pipeline_mode<synchronous>, transform_indices = @transform_3, window_bounds = array<i64: 1, 128>}, {transform_indices = @transform_4, window_bounds = array<i64: 1, 1, 128>}]} {
    %c0_i32 = arith.constant 0 : i32
    %0 = arith.cmpi eq, %arg1, %c0_i32 : i32
    %1 = arith.extui %0 : i1 to i32
    %c0_i32_0 = arith.constant 0 : i32
    %2 = arith.cmpi ne, %1, %c0_i32_0 : i32
    scf.if %2 {
      %cst_17 = arith.constant 0.000000e+00 : f32
      %27 = vector.broadcast %cst_17 : f32 to vector<1x128xf32>
      %c0_18 = arith.constant 0 : index
      %c0_19 = arith.constant 0 : index
      %28 = vector.load %arg7[%c0_18, %c0_19] : memref<1x128xf32, #tpu.memory_space<vmem>>, vector<1x128xf32>
      tpu.vector_store %arg7[%c0_18, %c0_19], %27 {strides = array<i32>} : memref<1x128xf32, #tpu.memory_space<vmem>>, vector<1x128xf32>,
    } else {
    }
    %c0 = arith.constant 0 : index
    %c0_1 = arith.constant 0 : index
    %c0_2 = arith.constant 0 : index
    %3 = vector.load %arg2[%c0, %c0_1, %c0_2] : memref<1x256x27xbf16, #tpu.memory_space<vmem>>, vector<1x256x27xbf16>
    %4 = vector.shape_cast %3 : vector<1x256x27xbf16> to vector<256x27xbf16>
    %c0_3 = arith.constant 0 : index
    %c0_4 = arith.constant 0 : index
    %5 = vector.load %arg3[%c0_3, %c0_4] : memref<27x128xbf16, #tpu.memory_space<vmem>>, vector<27x128xbf16>
    %cst = arith.constant dense<0.000000e+00> : vector<256x128xf32>
    %6 = tpu.matmul %4, %5, %cst {dimension_numbers = #tpu.dot_dimension_numbers<[1], [0], [0], [1], [0, 0, 1, 1], [], []>} : vector<256x27xbf16>, vector<27x128xbf16>, vector<256x128xf32> -> vector<256x128xf32>
    %c0_5 = arith.constant 0 : index
    %c0_6 = arith.constant 0 : index
    %7 = vector.load %arg4[%c0_5, %c0_6] : memref<1x128xf32, #tpu.memory_space<vmem>>, vector<1x128xf32>
    %8 = vector.broadcast %7 : vector<1x128xf32> to vector<256x128xf32>
    %9 = arith.mulf %6, %8 : vector<256x128xf32>
    %c0_7 = arith.constant 0 : index
    %c0_8 = arith.constant 0 : index
    %10 = vector.load %arg5[%c0_7, %c0_8] : memref<1x128xf32, #tpu.memory_space<vmem>>, vector<1x128xf32>
    %11 = vector.broadcast %10 : vector<1x128xf32> to vector<256x128xf32>
    %12 = arith.addf %9, %11 : vector<256x128xf32>
    %13 = arith.negf %12 : vector<256x128xf32>
    %14 = math.exp %13 : vector<256x128xf32>
    %cst_9 = arith.constant 1.000000e+00 : f32
    %15 = vector.broadcast %cst_9 : f32 to vector<256x128xf32>
    %16 = arith.addf %15, %14 : vector<256x128xf32>
    %17 = arith.divf %15, %16 : vector<256x128xf32>
    %18 = arith.mulf %12, %17 : vector<256x128xf32>
    %c0_10 = arith.constant 0 : index
    %c0_11 = arith.constant 0 : index
    %19 = vector.load %arg7[%c0_10, %c0_11] : memref<1x128xf32, #tpu.memory_space<vmem>>, vector<1x128xf32>
    %cst_12 = arith.constant dense<0.000000e+00> : vector<128xf32>
    %20 = vector.multi_reduction <add>, %18, %cst_12 [0] : vector<256x128xf32> to vector<128xf32>
    %21 = vector.shape_cast %20 : vector<128xf32> to vector<1x128xf32>
    %22 = arith.addf %19, %21 : vector<1x128xf32>
    %c0_13 = arith.constant 0 : index
    %c0_14 = arith.constant 0 : index
    %23 = vector.load %arg7[%c0_13, %c0_14] : memref<1x128xf32, #tpu.memory_space<vmem>>, vector<1x128xf32>
    tpu.vector_store %arg7[%c0_13, %c0_14], %22 {strides = array<i32>} : memref<1x128xf32, #tpu.memory_space<vmem>>, vector<1x128xf32>,
    %c0_i32_15 = arith.constant 0 : i32
    %24 = arith.cmpi eq, %arg1, %c0_i32_15 : i32
    %25 = arith.extui %24 : i1 to i32
    %c0_i32_16 = arith.constant 0 : i32
    %26 = arith.cmpi ne, %25, %c0_i32_16 : i32
    scf.if %26 {
      %c0_17 = arith.constant 0 : index
      %c0_18 = arith.constant 0 : index
      %27 = vector.load %arg7[%c0_17, %c0_18] : memref<1x128xf32, #tpu.memory_space<vmem>>, vector<1x128xf32>
      %cst_19 = arith.constant 3.906250e-03 : f32
      %28 = vector.broadcast %cst_19 : f32 to vector<1x128xf32>
      %29 = arith.mulf %27, %28 : vector<1x128xf32>
      %c0_20 = arith.constant 0 : index
      %c0_21 = arith.constant 0 : index
      %c0_22 = arith.constant 0 : index
      %30 = vector.load %arg6[%c0_20, %c0_21, %c0_22] : memref<1x1x128xf32, #tpu.memory_space<vmem>>, vector<1x1x128xf32>
      %31 = vector.shape_cast %30 : vector<1x1x128xf32> to vector<1x128xf32>
      %32 = vector.shape_cast %29 : vector<1x128xf32> to vector<1x1x128xf32>
      tpu.vector_store %arg6[%c0_20, %c0_21, %c0_22], %32 {strides = array<i32>} : memref<1x1x128xf32, #tpu.memory_space<vmem>>, vector<1x1x128xf32>,
    } else {
    }
    return
  }
  func.func @transform_0(%arg0: i32, %arg1: i32) -> (i32, i32, i32) {
    %c0_i32 = arith.constant 0 : i32
    %c0_i32_0 = arith.constant 0 : i32
    return %arg0, %arg1, %c0_i32 : i32, i32, i32
  }
  func.func @transform_1(%arg0: i32, %arg1: i32) -> (i32, i32) {
    %c0_i32 = arith.constant 0 : i32
    %c0_i32_0 = arith.constant 0 : i32
    %c0_i32_1 = arith.constant 0 : i32
    return %c0_i32, %c0_i32_0 : i32, i32
  }
  func.func @transform_2(%arg0: i32, %arg1: i32) -> (i32, i32) {
    %c0_i32 = arith.constant 0 : i32
    %c0_i32_0 = arith.constant 0 : i32
    %c0_i32_1 = arith.constant 0 : i32
    return %c0_i32, %c0_i32_0 : i32, i32
  }
  func.func @transform_3(%arg0: i32, %arg1: i32) -> (i32, i32) {
    %c0_i32 = arith.constant 0 : i32
    %c0_i32_0 = arith.constant 0 : i32
    %c0_i32_1 = arith.constant 0 : i32
    return %c0_i32, %c0_i32_0 : i32, i32
  }
  func.func @transform_4(%arg0: i32, %arg1: i32) -> (i32, i32, i32) {
    %c0_i32 = arith.constant 0 : i32
    %c0_i32_0 = arith.constant 0 : i32
    %c0_i32_1 = arith.constant 0 : i32
    return %arg0, %c0_i32, %c0_i32_0 : i32, i32, i32
  }
}

</mosaic_0001>

<llo_original>
// kernel: pose_efficientnet_forward.2
$region0: #{pose_efficientnet_forward.2}
  #allocation0 [shape = 'u32[]', space=smem, size = 0x4, offset = 0x4, fixed_abs, tag = 'smem constant byte address 0x4 - core index']
  #allocation1 [shape = 'u32[72,128]{1,0:T(1,128)}', space=vmem, size = 0x9000, scoped, tag = 'internal scratch']
  #allocation2 [shape = 'f32[1,128]{1,0:T(1,128)}', space=vmem, size = 0x200, scoped, tag = 'scratch operand']
  %s0 = inlined_call_operand.vmem [shape: bf16[2,256,27], index: 0, kind: input, shape index: {}]
  %s1 = inlined_call_operand.vmem [shape: bf16[27,128], index: 1, kind: input, shape index: {}]
  %s2 = inlined_call_operand.vmem [shape: f32[1,128], index: 2, kind: input, shape index: {}]
  %s3 = inlined_call_operand.vmem [shape: f32[1,128], index: 3, kind: input, shape index: {}]
  %s4 = inlined_call_operand.vmem [shape: f32[2,1,128], index: 4, kind: output, shape index: {}]
  %s5 = sld [smem:[#allocation0]]
  $region57: #{pose_efficientnet_forward.2} parent=0
    _
  %s7 = ssub.s32 1, %s5
  %s8 = scalar_select 0, %s7, %s5
  loop: start=0, step=1, limit=4
  $region2: #{pose_efficientnet_forward.2} parent=0 // loop_pre_header
    _
  $region3: #{pose_efficientnet_forward.2} parent=0 // loop_header
    %s10 = sphi 0, %s14
    %p11 = scmp.ge.s32.totalorder %s10, 4
    %s17 = sphi 0, %s29
    %s18 = sphi 0, %s25
    %s19 = sphi 0, %s17
    %s20 = sphi 0, %s18
    %s21 = sphi 0, %s19
    %s22 = sphi 0, %s20
    %s34 = sphi 0, %s36
    %s37 = sphi 0, %s34
    %s38 = sphi 0, %s37
    %s54 = sphi 0, %s38
    %s58 = sphi 0, %s58
    %s60 = sphi 0, %s58
    %s61 = sphi 0, %s60
    %s75 = sphi 0, %s61
    %s79 = sphi 0, %s79
    %s81 = sphi 0, %s79
    %s82 = sphi 0, %s81
    %s96 = sphi 0, %s82
    %s100 = sphi 0, %s100
    %s102 = sphi 0, %s100
    %s103 = sphi 0, %s102
    %s117 = sphi 0, %s103
    %s123 = sphi 0, %s125
    %s126 = sphi 0, %s123
    %s127 = sphi 0, %s126
    %s143 = sphi 0, %s127
  $region4: #{pose_efficientnet_forward.2} parent=0 // loop_header_branch
    %13 = sbr.rel (%p11) target = $region8
  $region5: #{pose_efficientnet_forward.2} parent=0 // loop_body
    %s15 = ssub.s32 %s10, 1
    %s16 = ssub.s32 %s10, 2
    %s23 = sadd.s32 1, %s18
    %p24 = scmp.ge.s32.totalorder %s23, 1
    %s25 = scalar_select %p24, 0, %s23
    %s26 = sadd.s32 1, %s17
    %s27 = scalar_select %p24, %s26, %s17
    %p28 = scmp.ge.s32.totalorder %s27, 2
    %s29 = scalar_select %p28, 0, %s27
    %s30 = ssub.s32 %s17, %s29
    %s31 = ssub.s32 %s18, %s25
    %s32 = sor.u32 %s30, %s31
    %p33 = scmp.eq.s32.totalorder %s32, 0
    %s35 = sadd.s32 %s34, 1
    %s36 = scalar_select %p33, %s34, %s35
    %p39 = pneg %p33
    %p40 = scmp.eq.s32.totalorder %s10, 1
    %p41 = por %p39, %p40
    %p42 = scmp.ne.s32.totalorder %s34, %s37
    %p43 = scmp.eq.s32.totalorder %s10, 0
    %p44 = por %p42, %p43
    %p45 = scmp.ne.s32.totalorder %s34, %s37
    %p46 = scmp.eq.s32.totalorder %s15, 1
    %p47 = por %p45, %p46
    %p48 = scmp.ne.s32.totalorder %s37, %s38
    %p49 = scmp.eq.s32.totalorder %s15, 0
    %p50 = por %p48, %p49
    %p51 = scmp.ne.s32.totalorder %s37, %s38
    %p52 = scmp.eq.s32.totalorder %s16, 1
    %p53 = por %p51, %p52
    %p55 = scmp.ne.s32.totalorder %s38, %s54
    %p56 = scmp.eq.s32.totalorder %s16, 0
    %p57 = por %p55, %p56
    %s59 = sadd.s32 %s58, 1
    %p62 = scmp.eq.s32.totalorder %s10, 1
    %p63 = scmp.ne.s32.totalorder %s58, %s60
    %p64 = scmp.eq.s32.totalorder %s10, 0
    %p65 = por %p63, %p64
    %p66 = scmp.ne.s32.totalorder %s58, %s60
    %p67 = scmp.eq.s32.totalorder %s15, 1
    %p68 = por %p66, %p67
    %p69 = scmp.ne.s32.totalorder %s60, %s61
    %p70 = scmp.eq.s32.totalorder %s15, 0
    %p71 = por %p69, %p70
    %p72 = scmp.ne.s32.totalorder %s60, %s61
    %p73 = scmp.eq.s32.totalorder %s16, 1
    %p74 = por %p72, %p73
    %p76 = scmp.ne.s32.totalorder %s61, %s75
    %p77 = scmp.eq.s32.totalorder %s16, 0
    %p78 = por %p76, %p77
    %s80 = sadd.s32 %s79, 1
    %p83 = scmp.eq.s32.totalorder %s10, 1
    %p84 = scmp.ne.s32.totalorder %s79, %s81
    %p85 = scmp.eq.s32.totalorder %s10, 0
    %p86 = por %p84, %p85
    %p87 = scmp.ne.s32.totalorder %s79, %s81
    %p88 = scmp.eq.s32.totalorder %s15, 1
    %p89 = por %p87, %p88
    %p90 = scmp.ne.s32.totalorder %s81, %s82
    %p91 = scmp.eq.s32.totalorder %s15, 0
    %p92 = por %p90, %p91
    %p93 = scmp.ne.s32.totalorder %s81, %s82
    %p94 = scmp.eq.s32.totalorder %s16, 1
    %p95 = por %p93, %p94
    %p97 = scmp.ne.s32.totalorder %s82, %s96
    %p98 = scmp.eq.s32.totalorder %s16, 0
    %p99 = por %p97, %p98
    %s101 = sadd.s32 %s100, 1
    %p104 = scmp.eq.s32.totalorder %s10, 1
    %p105 = scmp.ne.s32.totalorder %s100, %s102
    %p106 = scmp.eq.s32.totalorder %s10, 0
    %p107 = por %p105, %p106
    %p108 = scmp.ne.s32.totalorder %s100, %s102
    %p109 = scmp.eq.s32.totalorder %s15, 1
    %p110 = por %p108, %p109
    %p111 = scmp.ne.s32.totalorder %s102, %s103
    %p112 = scmp.eq.s32.totalorder %s15, 0
    %p113 = por %p111, %p112
    %p114 = scmp.ne.s32.totalorder %s102, %s103
    %p115 = scmp.eq.s32.totalorder %s16, 1
    %p116 = por %p114, %p115
    %p118 = scmp.ne.s32.totalorder %s103, %s117
    %p119 = scmp.eq.s32.totalorder %s16, 0
    %p120 = por %p118, %p119
    %s121 = ssub.s32 %s17, %s29
    %p122 = scmp.eq.s32.totalorder %s121, 0
    %s124 = sadd.s32 %s123, 1
    %s125 = scalar_select %p122, %s123, %s124
    %p128 = pneg %p122
    %p129 = scmp.eq.s32.totalorder %s10, 1
    %p130 = por %p128, %p129
    %p131 = scmp.ne.s32.totalorder %s123, %s126
    %p132 = scmp.eq.s32.totalorder %s10, 0
    %p133 = por %p131, %p132
    %p134 = scmp.ne.s32.totalorder %s123, %s126
    %p135 = scmp.eq.s32.totalorder %s15, 1
    %p136 = por %p134, %p135
    %p137 = scmp.ne.s32.totalorder %s126, %s127
    %p138 = scmp.eq.s32.totalorder %s15, 0
    %p139 = por %p137, %p138
    %p140 = scmp.ne.s32.totalorder %s126, %s127
    %p141 = scmp.eq.s32.totalorder %s16, 1
    %p142 = por %p140, %p141
    %p144 = scmp.ne.s32.totalorder %s127, %s143
    %p145 = scmp.eq.s32.totalorder %s16, 0
    %p146 = por %p144, %p145
    %p147 = scmp.le.s32.totalorder 1, %s10
    %p148 = scmp.lt.s32.totalorder %s10, 3
    %p149 = pnand %p147, %p148
    %p150 = pneg %p149
    // Predicated region
    $region9: #{pose_efficientnet_forward.2} parent=5 // pred_check
      _
    $region10: #{pose_efficientnet_forward.2} parent=5 // pred_check_branch
      %152 = sbr.rel (%p149) target = $region12
    $region11: #{pose_efficientnet_forward.2} parent=5 // pred_region
      %s153 = ssub.s32 %s10, 1
      // Predicated region
      $region13: #{pose_efficientnet_forward.2} parent=11 // pred_check
        %p154 = pneg %p71
      $region14: #{pose_efficientnet_forward.2} parent=11 // pred_check_branch
        %156 = sbr.rel (%p154) target = $region16
      $region15: #{pose_efficientnet_forward.2} parent=11 // pred_region
        _
      $region16: #{pose_efficientnet_forward.2} parent=11 // pred_fallthru
        _
      // Predicated region
      $region17: #{pose_efficientnet_forward.2} parent=11 // pred_check
        %p157 = pneg %p92
      $region18: #{pose_efficientnet_forward.2} parent=11 // pred_check_branch
        %159 = sbr.rel (%p157) target = $region20
      $region19: #{pose_efficientnet_forward.2} parent=11 // pred_region
        _
      $region20: #{pose_efficientnet_forward.2} parent=11 // pred_fallthru
        _
      // Predicated region
      $region21: #{pose_efficientnet_forward.2} parent=11 // pred_check
        %p160 = pneg %p113
      $region22: #{pose_efficientnet_forward.2} parent=11 // pred_check_branch
        %162 = sbr.rel (%p160) target = $region24
      $region23: #{pose_efficientnet_forward.2} parent=11 // pred_region
        _
      $region24: #{pose_efficientnet_forward.2} parent=11 // pred_fallthru
        _
    $region12: #{pose_efficientnet_forward.2} parent=5 // pred_fallthru
      _
    %p163 = scmp.lt.s32.totalorder %s10, 2
    // Predicated region
    $region25: #{pose_efficientnet_forward.2} parent=5 // pred_check
      %p164 = pneg %p163
    $region26: #{pose_efficientnet_forward.2} parent=5 // pred_check_branch
      %166 = sbr.rel (%p164) target = $region28
    $region27: #{pose_efficientnet_forward.2} parent=5 // pred_region
      // Predicated region
      $region29: #{pose_efficientnet_forward.2} parent=27 // pred_check
        %p167 = pneg %p44
      $region30: #{pose_efficientnet_forward.2} parent=27 // pred_check_branch
        %169 = sbr.rel (%p167) target = $region32
      $region31: #{pose_efficientnet_forward.2} parent=27 // pred_region
        %s170 = smul.u32 32, %s18
        %p171 = scmp.lt.s32.totalorder %s17, 1
        %s172 = scalar_select %p171, %s17, 1
        %p173 = scmp.lt.s32.totalorder %s170, 31
        %s174 = scalar_select %p173, %s170, 31
        %s175 = smul.addr %s172, 32
        %s176 = sadd.s32 %s174, %s175
        %s177 = smul.addr %s176, 4
        %s178 = scalar_lea.vmem %s0, %s177
        %s179 = smul.u32 32, %s18
      $region32: #{pose_efficientnet_forward.2} parent=27 // pred_fallthru
        _
    $region28: #{pose_efficientnet_forward.2} parent=5 // pred_fallthru
      _
    %p180 = scmp.le.s32.totalorder 1, %s10
    %p181 = scmp.lt.s32.totalorder %s10, 3
    %p182 = pnand %p180, %p181
    %p183 = pneg %p182
    // Predicated region
    $region33: #{pose_efficientnet_forward.2} parent=5 // pred_check
      _
    $region34: #{pose_efficientnet_forward.2} parent=5 // pred_check_branch
      %185 = sbr.rel (%p182) target = $region36
    $region35: #{pose_efficientnet_forward.2} parent=5 // pred_region
      %s186 = ssub.s32 %s10, 1
      %s187 = smul.u32 32, %s20
      %p188 = scmp.lt.s32.totalorder %s19, 1
      %s189 = scalar_select %p188, %s19, 1
      %p190 = scmp.lt.s32.totalorder %s187, 31
      %s191 = scalar_select %p190, %s187, 31
      %s192 = smul.addr %s189, 32
      %s193 = sadd.s32 %s191, %s192
      %s194 = smul.addr %s193, 4
      %s195 = scalar_lea.vmem %s0, %s194
      %p196 = pneg %p50
      %p197 = pneg %p47
      %p198 = pneg %p71
      %p199 = pneg %p68
      %p200 = pneg %p92
      %p201 = pneg %p89
      %p202 = pneg %p113
      %p203 = pneg %p110
      %p204 = pneg %p139
      %p205 = pneg %p136
      %p206 = scmp.lt.s32.totalorder %s19, 1
      %s207 = scalar_select %p206, %s19, 1
      %s208 = scalar_lea.vmem %s4, %s207
      %s209 = smul.u32 32, %s20
      %p210 = scmp.lt.s32.totalorder %s19, 1
      %s211 = scalar_select %p210, %s19, 1
      %p212 = scmp.lt.s32.totalorder %s209, 31
      %s213 = scalar_select %p212, %s209, 31
      %s214 = smul.addr %s211, 32
      %s215 = sadd.s32 %s213, %s214
      %s216 = smul.addr %s215, 4
      %s217 = scalar_lea.vmem %s0, %s216
      %s218 = smul.u32 32, %s20
      %p219 = scmp.lt.s32.totalorder %s19, 1
      %s220 = scalar_select %p219, %s19, 1
      %s221 = scalar_lea.vmem %s4, %s220
      %p223 = scmp.eq.s32.totalorder %s20, 0
      // Predicated region
      $region37: #{pose_efficientnet_forward.2} parent=35 // pred_check
        %p224 = pneg %p223
      $region38: #{pose_efficientnet_forward.2} parent=35 // pred_check_branch
        %226 = sbr.rel (%p224) target = $region40
      $region39: #{pose_efficientnet_forward.2} parent=35 // pred_region
        %227 = vst [vmem:[#allocation2] sm:$0x1] 0.0
      $region40: #{pose_efficientnet_forward.2} parent=35 // pred_fallthru
        _
      %v228 = vld [vmem:[%s217] sm:$0xf]
      %v229 = vld [vmem:[%s217 + $0x4] sm:$0xf]
      %v230 = vld [vmem:[%s217 + $0x8] sm:$0xf]
      %v231 = vld [vmem:[%s217 + $0xc] sm:$0xf]
      %v232 = vld [vmem:[%s217 + $0x10] sm:$0xf]
      %v233 = vld [vmem:[%s217 + $0x14] sm:$0xf]
      %v234 = vld [vmem:[%s217 + $0x18] sm:$0xf]
      %v235 = vld [vmem:[%s217 + $0x1c] sm:$0xf]
      %v236 = vld [vmem:[%s217 + $0x20] sm:$0xf]
      %v237 = vld [vmem:[%s217 + $0x24] sm:$0xf]
      %v238 = vld [vmem:[%s217 + $0x28] sm:$0xf]
      %v239 = vld [vmem:[%s217 + $0x2c] sm:$0xf]
      %v240 = vld [vmem:[%s217 + $0x30] sm:$0xf]
      %v241 = vld [vmem:[%s217 + $0x34] sm:$0xf]
      %v242 = vld [vmem:[%s217 + $0x38] sm:$0xf]
      %v243 = vld [vmem:[%s217 + $0x3c] sm:$0xf]
      %v244 = vld [vmem:[%s217 + $0x40] sm:$0xf]
      %v245 = vld [vmem:[%s217 + $0x44] sm:$0xf]
      %v246 = vld [vmem:[%s217 + $0x48] sm:$0xf]
      %v247 = vld [vmem:[%s217 + $0x4c] sm:$0xf]
      %v248 = vld [vmem:[%s217 + $0x50] sm:$0xf]
      %v249 = vld [vmem:[%s217 + $0x54] sm:$0xf]
      %v250 = vld [vmem:[%s217 + $0x58] sm:$0xf]
      %v251 = vld [vmem:[%s217 + $0x5c] sm:$0xf]
      %v252 = vld [vmem:[%s217 + $0x60] sm:$0xf]
      %v253 = vld [vmem:[%s217 + $0x64] sm:$0xf]
      %v254 = vld [vmem:[%s217 + $0x68] sm:$0xf]
      %v255 = vld [vmem:[%s217 + $0x6c] sm:$0xf]
      %v256 = vld [vmem:[%s217 + $0x70] sm:$0xf]
      %v257 = vld [vmem:[%s217 + $0x74] sm:$0xf]
      %v258 = vld [vmem:[%s217 + $0x78] sm:$0xf]
      %v259 = vld [vmem:[%s217 + $0x7c] sm:$0xf]
      %v260 = vld [vmem:[%s1] sm:$0xf]
      %v261 = vld [vmem:[%s1 + $0x4] sm:$0xf]
      %v262 = vld [vmem:[%s1 + $0x8] sm:$0xf]
      %v263 = vld [vmem:[%s1 + $0xc] sm:$0x3]
      %v296 = vunpack.c.l.b16 %v228
      %v297 = vunpack.c.l.b16 %v229
      %v298 = vunpack.c.l.b16 %v230
      %v299 = vunpack.c.l.b16 %v231
      %v300 = vunpack.c.l.b16 %v232
      %v301 = vunpack.c.l.b16 %v233
      %v302 = vunpack.c.l.b16 %v234
      %v303 = vunpack.c.l.b16 %v235
      %v304 = vunpack.c.l.b16 %v236
      %v305 = vunpack.c.l.b16 %v237
      %v306 = vunpack.c.l.b16 %v238
      %v307 = vunpack.c.l.b16 %v239
      %v308 = vunpack.c.l.b16 %v240
      %v309 = vunpack.c.l.b16 %v241
      %v310 = vunpack.c.l.b16 %v242
      %v311 = vunpack.c.l.b16 %v243
      %v312 = vunpack.c.l.b16 %v244
      %v313 = vunpack.c.l.b16 %v245
      %v314 = vunpack.c.l.b16 %v246
      %v315 = vunpack.c.l.b16 %v247
      %v316 = vunpack.c.l.b16 %v248
      %v317 = vunpack.c.l.b16 %v249
      %v318 = vunpack.c.l.b16 %v250
      %v319 = vunpack.c.l.b16 %v251
      %v320 = vunpack.c.l.b16 %v252
      %v321 = vunpack.c.l.b16 %v253
      %v322 = vunpack.c.l.b16 %v254
      %v323 = vunpack.c.l.b16 %v255
      %v324 = vunpack.c.l.b16 %v256
      %v325 = vunpack.c.l.b16 %v257
      %v326 = vunpack.c.l.b16 %v258
      %v327 = vunpack.c.l.b16 %v259
      %v328 = vpack.c.b16 %v297, %v296
      %v329 = vpack.c.b16 %v299, %v298
      %v330 = vpack.c.b16 %v301, %v300
      %v331 = vpack.c.b16 %v303, %v302
      %v332 = vpack.c.b16 %v305, %v304
      %v333 = vpack.c.b16 %v307, %v306
      %v334 = vpack.c.b16 %v309, %v308
      %v335 = vpack.c.b16 %v311, %v310
      %v336 = vpack.c.b16 %v313, %v312
      %v337 = vpack.c.b16 %v315, %v314
      %v338 = vpack.c.b16 %v317, %v316
      %v339 = vpack.c.b16 %v319, %v318
      %v340 = vpack.c.b16 %v321, %v320
      %v341 = vpack.c.b16 %v323, %v322
      %v342 = vpack.c.b16 %v325, %v324
      %v343 = vpack.c.b16 %v327, %v326
      %v348 = vunpack.c.l.b16 %v260
      %v349 = vunpack.c.l.b16 %v261
      %v350 = vunpack.c.l.b16 %v262
      %v351 = vunpack.c.l.b16 %v263
      %v352 = vpack.c.b16 %v349, %v348
      %v353 = vpack.c.b16 %v351, %v350
      %vm355 = vcmask 220160
      %v357 = vsel %vm355, %v328, 0
      %v360 = vsel %vm355, %v329, 0
      %v363 = vsel %vm355, %v330, 0
      %v366 = vsel %vm355, %v331, 0
      %v369 = vsel %vm355, %v332, 0
      %v372 = vsel %vm355, %v333, 0
      %v375 = vsel %vm355, %v334, 0
      %v378 = vsel %vm355, %v335, 0
      %v381 = vsel %vm355, %v336, 0
      %v384 = vsel %vm355, %v337, 0
      %v387 = vsel %vm355, %v338, 0
      %v390 = vsel %vm355, %v339, 0
      %v393 = vsel %vm355, %v340, 0
      %v396 = vsel %vm355, %v341, 0
      %v399 = vsel %vm355, %v342, 0
      %v402 = vsel %vm355, %v343, 0
      %vm404 = vcmask 1044480
      %vm405 = vcmask 1045504
      %v406 = vsel %vm404, 4294967295, 65535
      %v407 = vsel %vm405, %v406, 0
      %v409 = vand.u32 %v353, %v407
      %411 = vmatpush.bf16.msra.mxu0 0
      %412 = vmatpush.bf16.msra.mxu0 0
      %413 = vmatpush.bf16.msra.mxu0 0
      %414 = vmatpush.bf16.msra.mxu0 0
      %415 = vmatpush.bf16.msra.mxu0 0
      %416 = vmatpush.bf16.msra.mxu0 0
      %417 = vmatpush.bf16.msra.mxu0 %v409
      %418 = vmatpush.bf16.msra.mxu0 %v352
      %419 = vmatmul.bf16.gmra.mxu0 %v357
      %v420 = vpop.f32.mrf.mxu0
      %v421 = vadd.f32 0.0, %v420
      %v422 = vpop.f32.mrf.mxu0
      %v423 = vadd.f32 0.0, %v422
      %424 = vmatmul.bf16.gmra.mxu0 %v360
      %v425 = vpop.f32.mrf.mxu0
      %v426 = vadd.f32 0.0, %v425
      %v427 = vpop.f32.mrf.mxu0
      %v428 = vadd.f32 0.0, %v427
      %429 = vmatmul.bf16.gmra.mxu0 %v363
      %v430 = vpop.f32.mrf.mxu0
      %v431 = vadd.f32 0.0, %v430
      %v432 = vpop.f32.mrf.mxu0
      %v433 = vadd.f32 0.0, %v432
      %434 = vmatmul.bf16.gmra.mxu0 %v366
      %v435 = vpop.f32.mrf.mxu0
      %v436 = vadd.f32 0.0, %v435
      %v437 = vpop.f32.mrf.mxu0
      %v438 = vadd.f32 0.0, %v437
      %439 = vmatmul.bf16.gmra.mxu0 %v369
      %v440 = vpop.f32.mrf.mxu0
      %v441 = vadd.f32 0.0, %v440
      %v442 = vpop.f32.mrf.mxu0
      %v443 = vadd.f32 0.0, %v442
      %444 = vmatmul.bf16.gmra.mxu0 %v372
      %v445 = vpop.f32.mrf.mxu0
      %v446 = vadd.f32 0.0, %v445
      %v447 = vpop.f32.mrf.mxu0
      %v448 = vadd.f32 0.0, %v447
      %449 = vmatmul.bf16.gmra.mxu0 %v375
      %v450 = vpop.f32.mrf.mxu0
      %v451 = vadd.f32 0.0, %v450
      %v452 = vpop.f32.mrf.mxu0
      %v453 = vadd.f32 0.0, %v452
      %454 = vmatmul.bf16.gmra.mxu0 %v378
      %v455 = vpop.f32.mrf.mxu0
      %v456 = vadd.f32 0.0, %v455
      %v457 = vpop.f32.mrf.mxu0
      %v458 = vadd.f32 0.0, %v457
      %459 = vmatmul.bf16.gmra.mxu0 %v381
      %v460 = vpop.f32.mrf.mxu0
      %v461 = vadd.f32 0.0, %v460
      %v462 = vpop.f32.mrf.mxu0
      %v463 = vadd.f32 0.0, %v462
      %464 = vmatmul.bf16.gmra.mxu0 %v384
      %v465 = vpop.f32.mrf.mxu0
      %v466 = vadd.f32 0.0, %v465
      %v467 = vpop.f32.mrf.mxu0
      %v468 = vadd.f32 0.0, %v467
      %469 = vmatmul.bf16.gmra.mxu0 %v387
      %v470 = vpop.f32.mrf.mxu0
      %v471 = vadd.f32 0.0, %v470
      %v472 = vpop.f32.mrf.mxu0
      %v473 = vadd.f32 0.0, %v472
      %474 = vmatmul.bf16.gmra.mxu0 %v390
      %v475 = vpop.f32.mrf.mxu0
      %v476 = vadd.f32 0.0, %v475
      %v477 = vpop.f32.mrf.mxu0
      %v478 = vadd.f32 0.0, %v477
      %479 = vmatmul.bf16.gmra.mxu0 %v393
      %v480 = vpop.f32.mrf.mxu0
      %v481 = vadd.f32 0.0, %v480
      %v482 = vpop.f32.mrf.mxu0
      %v483 = vadd.f32 0.0, %v482
      %484 = vmatmul.bf16.gmra.mxu0 %v396
      %v485 = vpop.f32.mrf.mxu0
      %v486 = vadd.f32 0.0, %v485
      %v487 = vpop.f32.mrf.mxu0
      %v488 = vadd.f32 0.0, %v487
      %489 = vmatmul.bf16.gmra.mxu0 %v399
      %v490 = vpop.f32.mrf.mxu0
      %v491 = vadd.f32 0.0, %v490
      %v492 = vpop.f32.mrf.mxu0
      %v493 = vadd.f32 0.0, %v492
      %494 = vmatmul.bf16.gmra.mxu0 %v402
      %v495 = vpop.f32.mrf.mxu0
      %v496 = vadd.f32 0.0, %v495
      %v497 = vpop.f32.mrf.mxu0
      %v498 = vadd.f32 0.0, %v497
      %499 = vdwg.mxu0
      %v500 = vld [vmem:[%s2] sm:$0x1]
      %v502 = vperm.slane %v500, 0
      %v504 = vmul.f32 %v421, %v502
      %v505 = vmul.f32 %v423, %v502
      %v506 = vmul.f32 %v426, %v502
      %v507 = vmul.f32 %v428, %v502
      %v508 = vmul.f32 %v431, %v502
      %v509 = vmul.f32 %v433, %v502
      %v510 = vmul.f32 %v436, %v502
      %v511 = vmul.f32 %v438, %v502
      %v512 = vmul.f32 %v441, %v502
      %v513 = vmul.f32 %v443, %v502
      %v514 = vmul.f32 %v446, %v502
      %v515 = vmul.f32 %v448, %v502
      %v516 = vmul.f32 %v451, %v502
      %v517 = vmul.f32 %v453, %v502
      %v518 = vmul.f32 %v456, %v502
      %v519 = vmul.f32 %v458, %v502
      %v520 = vmul.f32 %v461, %v502
      %v521 = vmul.f32 %v463, %v502
      %v522 = vmul.f32 %v466, %v502
      %v523 = vmul.f32 %v468, %v502
      %v524 = vmul.f32 %v471, %v502
      %v525 = vmul.f32 %v473, %v502
      %v526 = vmul.f32 %v476, %v502
      %v527 = vmul.f32 %v478, %v502
      %v528 = vmul.f32 %v481, %v502
      %v529 = vmul.f32 %v483, %v502
      %v530 = vmul.f32 %v486, %v502
      %v531 = vmul.f32 %v488, %v502
      %v532 = vmul.f32 %v491, %v502
      %v533 = vmul.f32 %v493, %v502
      %v534 = vmul.f32 %v496, %v502
      %v535 = vmul.f32 %v498, %v502
      %v536 = vld [vmem:[%s3] sm:$0x1]
      %v538 = vperm.slane %v536, 0
      %v540 = vadd.f32 %v504, %v538
      %v541 = vadd.f32 %v505, %v538
      %v542 = vadd.f32 %v506, %v538
      %v543 = vadd.f32 %v507, %v538
      %v544 = vadd.f32 %v508, %v538
      %v545 = vadd.f32 %v509, %v538
      %v546 = vadd.f32 %v510, %v538
      %v547 = vadd.f32 %v511, %v538
      %v548 = vadd.f32 %v512, %v538
      %v549 = vadd.f32 %v513, %v538
      %v550 = vadd.f32 %v514, %v538
      %v551 = vadd.f32 %v515, %v538
      %v552 = vadd.f32 %v516, %v538
      %v553 = vadd.f32 %v517, %v538
      %v554 = vadd.f32 %v518, %v538
      %v555 = vadd.f32 %v519, %v538
      %v556 = vadd.f32 %v520, %v538
      %v557 = vadd.f32 %v521, %v538
      %v558 = vadd.f32 %v522, %v538
      %v559 = vadd.f32 %v523, %v538
      %v560 = vadd.f32 %v524, %v538
      %v561 = vadd.f32 %v525, %v538
      %v562 = vadd.f32 %v526, %v538
      %v563 = vadd.f32 %v527, %v538
      %v564 = vadd.f32 %v528, %v538
      %v565 = vadd.f32 %v529, %v538
      %v566 = vadd.f32 %v530, %v538
      %v567 = vadd.f32 %v531, %v538
      %v568 = vadd.f32 %v532, %v538
      %v569 = vadd.f32 %v533, %v538
      %v570 = vadd.f32 %v534, %v538
      %v571 = vadd.f32 %v535, %v538
      %v572 = vxor.u32 %v540, 2147483648
      %v573 = vxor.u32 %v541, 2147483648
      %v574 = vxor.u32 %v542, 2147483648
      %v575 = vxor.u32 %v543, 2147483648
      %v576 = vxor.u32 %v544, 2147483648
      %v577 = vxor.u32 %v545, 2147483648
      %v578 = vxor.u32 %v546, 2147483648
      %v579 = vxor.u32 %v547, 2147483648
      %v580 = vxor.u32 %v548, 2147483648
      %v581 = vxor.u32 %v549, 2147483648
      %v582 = vxor.u32 %v550, 2147483648
      %v583 = vxor.u32 %v551, 2147483648
      %v584 = vxor.u32 %v552, 2147483648
      %v585 = vxor.u32 %v553, 2147483648
      %v586 = vxor.u32 %v554, 2147483648
      %v587 = vxor.u32 %v555, 2147483648
      %v588 = vxor.u32 %v556, 2147483648
      %v589 = vxor.u32 %v557, 2147483648
      %v590 = vxor.u32 %v558, 2147483648
      %v591 = vxor.u32 %v559, 2147483648
      %v592 = vxor.u32 %v560, 2147483648
      %v593 = vxor.u32 %v561, 2147483648
      %v594 = vxor.u32 %v562, 2147483648
      %v595 = vxor.u32 %v563, 2147483648
      %v596 = vxor.u32 %v564, 2147483648
      %v597 = vxor.u32 %v565, 2147483648
      %v598 = vxor.u32 %v566, 2147483648
      %v599 = vxor.u32 %v567, 2147483648
      %v600 = vxor.u32 %v568, 2147483648
      %v601 = vxor.u32 %v569, 2147483648
      %v602 = vxor.u32 %v570, 2147483648
      %v603 = vxor.u32 %v571, 2147483648
      %v604 = vmul.f32 %v572, 1.442695
      %v605 = vpow.pop %v604
      %v606 = vmul.f32 %v573, 1.442695
      %v607 = vpow.pop %v606
      %v608 = vmul.f32 %v574, 1.442695
      %v609 = vpow.pop %v608
      %v610 = vmul.f32 %v575, 1.442695
      %v611 = vpow.pop %v610
      %v612 = vmul.f32 %v576, 1.442695
      %v613 = vpow.pop %v612
      %v614 = vmul.f32 %v577, 1.442695
      %v615 = vpow.pop %v614
      %v616 = vmul.f32 %v578, 1.442695
      %v617 = vpow.pop %v616
      %v618 = vmul.f32 %v579, 1.442695
      %v619 = vpow.pop %v618
      %v620 = vmul.f32 %v580, 1.442695
      %v621 = vpow.pop %v620
      %v622 = vmul.f32 %v581, 1.442695
      %v623 = vpow.pop %v622
      %v624 = vmul.f32 %v582, 1.442695
      %v625 = vpow.pop %v624
      %v626 = vmul.f32 %v583, 1.442695
      %v627 = vpow.pop %v626
      %v628 = vmul.f32 %v584, 1.442695
      %v629 = vpow.pop %v628
      %v630 = vmul.f32 %v585, 1.442695
      %v631 = vpow.pop %v630
      %v632 = vmul.f32 %v586, 1.442695
      %v633 = vpow.pop %v632
      %v634 = vmul.f32 %v587, 1.442695
      %v635 = vpow.pop %v634
      %v636 = vmul.f32 %v588, 1.442695
      %v637 = vpow.pop %v636
      %v638 = vmul.f32 %v589, 1.442695
      %v639 = vpow.pop %v638
      %v640 = vmul.f32 %v590, 1.442695
      %v641 = vpow.pop %v640
      %v642 = vmul.f32 %v591, 1.442695
      %v643 = vpow.pop %v642
      %v644 = vmul.f32 %v592, 1.442695
      %v645 = vpow.pop %v644
      %v646 = vmul.f32 %v593, 1.442695
      %v647 = vpow.pop %v646
      %v648 = vmul.f32 %v594, 1.442695
      %v649 = vpow.pop %v648
      %v650 = vmul.f32 %v595, 1.442695
      %v651 = vpow.pop %v650
      %v652 = vmul.f32 %v596, 1.442695
      %v653 = vpow.pop %v652
      %v654 = vmul.f32 %v597, 1.442695
      %v655 = vpow.pop %v654
      %v656 = vmul.f32 %v598, 1.442695
      %v657 = vpow.pop %v656
      %v658 = vmul.f32 %v599, 1.442695
      %v659 = vpow.pop %v658
      %v660 = vmul.f32 %v600, 1.442695
      %v661 = vpow.pop %v660
      %v662 = vmul.f32 %v601, 1.442695
      %v663 = vpow.pop %v662
      %v664 = vmul.f32 %v602, 1.442695
      %v665 = vpow.pop %v664
      %v666 = vmul.f32 %v603, 1.442695
      %v667 = vpow.pop %v666
      %v668 = vadd.f32 %v605, 1.0
      %v669 = vadd.f32 %v607, 1.0
      %v670 = vadd.f32 %v609, 1.0
      %v671 = vadd.f32 %v611, 1.0
      %v672 = vadd.f32 %v613, 1.0
      %v673 = vadd.f32 %v615, 1.0
      %v674 = vadd.f32 %v617, 1.0
      %v675 = vadd.f32 %v619, 1.0
      %v676 = vadd.f32 %v621, 1.0
      %v677 = vadd.f32 %v623, 1.0
      %v678 = vadd.f32 %v625, 1.0
      %v679 = vadd.f32 %v627, 1.0
      %v680 = vadd.f32 %v629, 1.0
      %v681 = vadd.f32 %v631, 1.0
      %v682 = vadd.f32 %v633, 1.0
      %v683 = vadd.f32 %v635, 1.0
      %v684 = vadd.f32 %v637, 1.0
      %v685 = vadd.f32 %v639, 1.0
      %v686 = vadd.f32 %v641, 1.0
      %v687 = vadd.f32 %v643, 1.0
      %v688 = vadd.f32 %v645, 1.0
      %v689 = vadd.f32 %v647, 1.0
      %v690 = vadd.f32 %v649, 1.0
      %v691 = vadd.f32 %v651, 1.0
      %v692 = vadd.f32 %v653, 1.0
      %v693 = vadd.f32 %v655, 1.0
      %v694 = vadd.f32 %v657, 1.0
      %v695 = vadd.f32 %v659, 1.0
      %v696 = vadd.f32 %v661, 1.0
      %v697 = vadd.f32 %v663, 1.0
      %v698 = vadd.f32 %v665, 1.0
      %v699 = vadd.f32 %v667, 1.0
      %v700 = vrcp.pop %v668
      %v701 = vmul.f32 %v668, %v700
      %v702 = vsub.f32 1.0, %v701
      %v703 = vmul.f32 %v700, %v702
      %v704 = vadd.f32 %v700, %v703
      %vm705 = vweird.f32 %v668
      %vm706 = vweird.f32 %v700
      %vm707 = vmor %vm705, %vm706
      %v708 = vsel %vm707, %v700, %v704
      %v709 = vand.u32 2147483647, %v668
      %vm710 = vcmp.eq.f32.partialorder %v709, 8.507059e+37
      %v711 = vand.u32 %v668, 2147483648
      %v712 = vor.u32 1.1754944e-38, %v711
      %v713 = vsel %vm710, %v712, %v708
      %v714 = vmul.f32 1.0, %v713
      %v715 = vrcp.pop %v669
      %v716 = vmul.f32 %v669, %v715
      %v717 = vsub.f32 1.0, %v716
      %v718 = vmul.f32 %v715, %v717
      %v719 = vadd.f32 %v715, %v718
      %vm720 = vweird.f32 %v669
      %vm721 = vweird.f32 %v715
      %vm722 = vmor %vm720, %vm721
      %v723 = vsel %vm722, %v715, %v719
      %v724 = vand.u32 2147483647, %v669
      %vm725 = vcmp.eq.f32.partialorder %v724, 8.507059e+37
      %v726 = vand.u32 %v669, 2147483648
      %v727 = vor.u32 1.1754944e-38, %v726
      %v728 = vsel %vm725, %v727, %v723
      %v729 = vmul.f32 1.0, %v728
      %v730 = vrcp.pop %v670
      %v731 = vmul.f32 %v670, %v730
      %v732 = vsub.f32 1.0, %v731
      %v733 = vmul.f32 %v730, %v732
      %v734 = vadd.f32 %v730, %v733
      %vm735 = vweird.f32 %v670
      %vm736 = vweird.f32 %v730
      %vm737 = vmor %vm735, %vm736
      %v738 = vsel %vm737, %v730, %v734
      %v739 = vand.u32 2147483647, %v670
      %vm740 = vcmp.eq.f32.partialorder %v739, 8.507059e+37
      %v741 = vand.u32 %v670, 2147483648
      %v742 = vor.u32 1.1754944e-38, %v741
      %v743 = vsel %vm740, %v742, %v738
      %v744 = vmul.f32 1.0, %v743
      %v745 = vrcp.pop %v671
      %v746 = vmul.f32 %v671, %v745
      %v747 = vsub.f32 1.0, %v746
      %v748 = vmul.f32 %v745, %v747
      %v749 = vadd.f32 %v745, %v748
      %vm750 = vweird.f32 %v671
      %vm751 = vweird.f32 %v745
      %vm752 = vmor %vm750, %vm751
      %v753 = vsel %vm752, %v745, %v749
      %v754 = vand.u32 2147483647, %v671
      %vm755 = vcmp.eq.f32.partialorder %v754, 8.507059e+37
      %v756 = vand.u32 %v671, 2147483648
      %v757 = vor.u32 1.1754944e-38, %v756
      %v758 = vsel %vm755, %v757, %v753
      %v759 = vmul.f32 1.0, %v758
      %v760 = vrcp.pop %v672
      %v761 = vmul.f32 %v672, %v760
      %v762 = vsub.f32 1.0, %v761
      %v763 = vmul.f32 %v760, %v762
      %v764 = vadd.f32 %v760, %v763
      %vm765 = vweird.f32 %v672
      %vm766 = vweird.f32 %v760
      %vm767 = vmor %vm765, %vm766
      %v768 = vsel %vm767, %v760, %v764
      %v769 = vand.u32 2147483647, %v672
      %vm770 = vcmp.eq.f32.partialorder %v769, 8.507059e+37
      %v771 = vand.u32 %v672, 2147483648
      %v772 = vor.u32 1.1754944e-38, %v771
      %v773 = vsel %vm770, %v772, %v768
      %v774 = vmul.f32 1.0, %v773
      %v775 = vrcp.pop %v673
      %v776 = vmul.f32 %v673, %v775
      %v777 = vsub.f32 1.0, %v776
      %v778 = vmul.f32 %v775, %v777
      %v779 = vadd.f32 %v775, %v778
      %vm780 = vweird.f32 %v673
      %vm781 = vweird.f32 %v775
      %vm782 = vmor %vm780, %vm781
      %v783 = vsel %vm782, %v775, %v779
      %v784 = vand.u32 2147483647, %v673
      %vm785 = vcmp.eq.f32.partialorder %v784, 8.507059e+37
      %v786 = vand.u32 %v673, 2147483648
      %v787 = vor.u32 1.1754944e-38, %v786
      %v788 = vsel %vm785, %v787, %v783
      %v789 = vmul.f32 1.0, %v788
      %v790 = vrcp.pop %v674
      %v791 = vmul.f32 %v674, %v790
      %v792 = vsub.f32 1.0, %v791
      %v793 = vmul.f32 %v790, %v792
      %v794 = vadd.f32 %v790, %v793
      %vm795 = vweird.f32 %v674
      %vm796 = vweird.f32 %v790
      %vm797 = vmor %vm795, %vm796
      %v798 = vsel %vm797, %v790, %v794
      %v799 = vand.u32 2147483647, %v674
      %vm800 = vcmp.eq.f32.partialorder %v799, 8.507059e+37
      %v801 = vand.u32 %v674, 2147483648
      %v802 = vor.u32 1.1754944e-38, %v801
      %v803 = vsel %vm800, %v802, %v798
      %v804 = vmul.f32 1.0, %v803
      %v805 = vrcp.pop %v675
      %v806 = vmul.f32 %v675, %v805
      %v807 = vsub.f32 1.0, %v806
      %v808 = vmul.f32 %v805, %v807
      %v809 = vadd.f32 %v805, %v808
      %vm810 = vweird.f32 %v675
      %vm811 = vweird.f32 %v805
      %vm812 = vmor %vm810, %vm811
      %v813 = vsel %vm812, %v805, %v809
      %v814 = vand.u32 2147483647, %v675
      %vm815 = vcmp.eq.f32.partialorder %v814, 8.507059e+37
      %v816 = vand.u32 %v675, 2147483648
      %v817 = vor.u32 1.1754944e-38, %v816
      %v818 = vsel %vm815, %v817, %v813
      %v819 = vmul.f32 1.0, %v818
      %v820 = vrcp.pop %v676
      %v821 = vmul.f32 %v676, %v820
      %v822 = vsub.f32 1.0, %v821
      %v823 = vmul.f32 %v820, %v822
      %v824 = vadd.f32 %v820, %v823
      %vm825 = vweird.f32 %v676
      %vm826 = vweird.f32 %v820
      %vm827 = vmor %vm825, %vm826
      %v828 = vsel %vm827, %v820, %v824
      %v829 = vand.u32 2147483647, %v676
      %vm830 = vcmp.eq.f32.partialorder %v829, 8.507059e+37
      %v831 = vand.u32 %v676, 2147483648
      %v832 = vor.u32 1.1754944e-38, %v831
      %v833 = vsel %vm830, %v832, %v828
      %v834 = vmul.f32 1.0, %v833
      %v835 = vrcp.pop %v677
      %v836 = vmul.f32 %v677, %v835
      %v837 = vsub.f32 1.0, %v836
      %v838 = vmul.f32 %v835, %v837
      %v839 = vadd.f32 %v835, %v838
      %vm840 = vweird.f32 %v677
      %vm841 = vweird.f32 %v835
      %vm842 = vmor %vm840, %vm841
      %v843 = vsel %vm842, %v835, %v839
      %v844 = vand.u32 2147483647, %v677
      %vm845 = vcmp.eq.f32.partialorder %v844, 8.507059e+37
      %v846 = vand.u32 %v677, 2147483648
      %v847 = vor.u32 1.1754944e-38, %v846
      %v848 = vsel %vm845, %v847, %v843
      %v849 = vmul.f32 1.0, %v848
      %v850 = vrcp.pop %v678
      %v851 = vmul.f32 %v678, %v850
      %v852 = vsub.f32 1.0, %v851
      %v853 = vmul.f32 %v850, %v852
      %v854 = vadd.f32 %v850, %v853
      %vm855 = vweird.f32 %v678
      %vm856 = vweird.f32 %v850
      %vm857 = vmor %vm855, %vm856
      %v858 = vsel %vm857, %v850, %v854
      %v859 = vand.u32 2147483647, %v678
      %vm860 = vcmp.eq.f32.partialorder %v859, 8.507059e+37
      %v861 = vand.u32 %v678, 2147483648
      %v862 = vor.u32 1.1754944e-38, %v861
      %v863 = vsel %vm860, %v862, %v858
      %v864 = vmul.f32 1.0, %v863
      %v865 = vrcp.pop %v679
      %v866 = vmul.f32 %v679, %v865
      %v867 = vsub.f32 1.0, %v866
      %v868 = vmul.f32 %v865, %v867
      %v869 = vadd.f32 %v865, %v868
      %vm870 = vweird.f32 %v679
      %vm871 = vweird.f32 %v865
      %vm872 = vmor %vm870, %vm871
      %v873 = vsel %vm872, %v865, %v869
      %v874 = vand.u32 2147483647, %v679
      %vm875 = vcmp.eq.f32.partialorder %v874, 8.507059e+37
      %v876 = vand.u32 %v679, 2147483648
      %v877 = vor.u32 1.1754944e-38, %v876
      %v878 = vsel %vm875, %v877, %v873
      %v879 = vmul.f32 1.0, %v878
      %v880 = vrcp.pop %v680
      %v881 = vmul.f32 %v680, %v880
      %v882 = vsub.f32 1.0, %v881
      %v883 = vmul.f32 %v880, %v882
      %v884 = vadd.f32 %v880, %v883
      %vm885 = vweird.f32 %v680
      %vm886 = vweird.f32 %v880
      %vm887 = vmor %vm885, %vm886
      %v888 = vsel %vm887, %v880, %v884
      %v889 = vand.u32 2147483647, %v680
      %vm890 = vcmp.eq.f32.partialorder %v889, 8.507059e+37
      %v891 = vand.u32 %v680, 2147483648
      %v892 = vor.u32 1.1754944e-38, %v891
      %v893 = vsel %vm890, %v892, %v888
      %v894 = vmul.f32 1.0, %v893
      %v895 = vrcp.pop %v681
      %v896 = vmul.f32 %v681, %v895
      %v897 = vsub.f32 1.0, %v896
      %v898 = vmul.f32 %v895, %v897
      %v899 = vadd.f32 %v895, %v898
      %vm900 = vweird.f32 %v681
      %vm901 = vweird.f32 %v895
      %vm902 = vmor %vm900, %vm901
      %v903 = vsel %vm902, %v895, %v899
      %v904 = vand.u32 2147483647, %v681
      %vm905 = vcmp.eq.f32.partialorder %v904, 8.507059e+37
      %v906 = vand.u32 %v681, 2147483648
      %v907 = vor.u32 1.1754944e-38, %v906
      %v908 = vsel %vm905, %v907, %v903
      %v909 = vmul.f32 1.0, %v908
      %v910 = vrcp.pop %v682
      %v911 = vmul.f32 %v682, %v910
      %v912 = vsub.f32 1.0, %v911
      %v913 = vmul.f32 %v910, %v912
      %v914 = vadd.f32 %v910, %v913
      %vm915 = vweird.f32 %v682
      %vm916 = vweird.f32 %v910
      %vm917 = vmor %vm915, %vm916
      %v918 = vsel %vm917, %v910, %v914
      %v919 = vand.u32 2147483647, %v682
      %vm920 = vcmp.eq.f32.partialorder %v919, 8.507059e+37
      %v921 = vand.u32 %v682, 2147483648
      %v922 = vor.u32 1.1754944e-38, %v921
      %v923 = vsel %vm920, %v922, %v918
      %v924 = vmul.f32 1.0, %v923
      %v925 = vrcp.pop %v683
      %v926 = vmul.f32 %v683, %v925
      %v927 = vsub.f32 1.0, %v926
      %v928 = vmul.f32 %v925, %v927
      %v929 = vadd.f32 %v925, %v928
      %vm930 = vweird.f32 %v683
      %vm931 = vweird.f32 %v925
      %vm932 = vmor %vm930, %vm931
      %v933 = vsel %vm932, %v925, %v929
      %v934 = vand.u32 2147483647, %v683
      %vm935 = vcmp.eq.f32.partialorder %v934, 8.507059e+37
      %v936 = vand.u32 %v683, 2147483648
      %v937 = vor.u32 1.1754944e-38, %v936
      %v938 = vsel %vm935, %v937, %v933
      %v939 = vmul.f32 1.0, %v938
      %v940 = vrcp.pop %v684
      %v941 = vmul.f32 %v684, %v940
      %v942 = vsub.f32 1.0, %v941
      %v943 = vmul.f32 %v940, %v942
      %v944 = vadd.f32 %v940, %v943
      %vm945 = vweird.f32 %v684
      %vm946 = vweird.f32 %v940
      %vm947 = vmor %vm945, %vm946
      %v948 = vsel %vm947, %v940, %v944
      %v949 = vand.u32 2147483647, %v684
      %vm950 = vcmp.eq.f32.partialorder %v949, 8.507059e+37
      %v951 = vand.u32 %v684, 2147483648
      %v952 = vor.u32 1.1754944e-38, %v951
      %v953 = vsel %vm950, %v952, %v948
      %v954 = vmul.f32 1.0, %v953
      %v955 = vrcp.pop %v685
      %v956 = vmul.f32 %v685, %v955
      %v957 = vsub.f32 1.0, %v956
      %v958 = vmul.f32 %v955, %v957
      %v959 = vadd.f32 %v955, %v958
      %vm960 = vweird.f32 %v685
      %vm961 = vweird.f32 %v955
      %vm962 = vmor %vm960, %vm961
      %v963 = vsel %vm962, %v955, %v959
      %v964 = vand.u32 2147483647, %v685
      %vm965 = vcmp.eq.f32.partialorder %v964, 8.507059e+37
      %v966 = vand.u32 %v685, 2147483648
      %v967 = vor.u32 1.1754944e-38, %v966
      %v968 = vsel %vm965, %v967, %v963
      %v969 = vmul.f32 1.0, %v968
      %v970 = vrcp.pop %v686
      %v971 = vmul.f32 %v686, %v970
      %v972 = vsub.f32 1.0, %v971
      %v973 = vmul.f32 %v970, %v972
      %v974 = vadd.f32 %v970, %v973
      %vm975 = vweird.f32 %v686
      %vm976 = vweird.f32 %v970
      %vm977 = vmor %vm975, %vm976
      %v978 = vsel %vm977, %v970, %v974
      %v979 = vand.u32 2147483647, %v686
      %vm980 = vcmp.eq.f32.partialorder %v979, 8.507059e+37
      %v981 = vand.u32 %v686, 2147483648
      %v982 = vor.u32 1.1754944e-38, %v981
      %v983 = vsel %vm980, %v982, %v978
      %v984 = vmul.f32 1.0, %v983
      %v985 = vrcp.pop %v687
      %v986 = vmul.f32 %v687, %v985
      %v987 = vsub.f32 1.0, %v986
      %v988 = vmul.f32 %v985, %v987
      %v989 = vadd.f32 %v985, %v988
      %vm990 = vweird.f32 %v687
      %vm991 = vweird.f32 %v985
      %vm992 = vmor %vm990, %vm991
      %v993 = vsel %vm992, %v985, %v989
      %v994 = vand.u32 2147483647, %v687
      %vm995 = vcmp.eq.f32.partialorder %v994, 8.507059e+37
      %v996 = vand.u32 %v687, 2147483648
      %v997 = vor.u32 1.1754944e-38, %v996
      %v998 = vsel %vm995, %v997, %v993
      %v999 = vmul.f32 1.0, %v998
      %v1000 = vrcp.pop %v688
      %v1001 = vmul.f32 %v688, %v1000
      %v1002 = vsub.f32 1.0, %v1001
      %v1003 = vmul.f32 %v1000, %v1002
      %v1004 = vadd.f32 %v1000, %v1003
      %vm1005 = vweird.f32 %v688
      %vm1006 = vweird.f32 %v1000
      %vm1007 = vmor %vm1005, %vm1006
      %v1008 = vsel %vm1007, %v1000, %v1004
      %v1009 = vand.u32 2147483647, %v688
      %vm1010 = vcmp.eq.f32.partialorder %v1009, 8.507059e+37
      %v1011 = vand.u32 %v688, 2147483648
      %v1012 = vor.u32 1.1754944e-38, %v1011
      %v1013 = vsel %vm1010, %v1012, %v1008
      %v1014 = vmul.f32 1.0, %v1013
      %v1015 = vrcp.pop %v689
      %v1016 = vmul.f32 %v689, %v1015
      %v1017 = vsub.f32 1.0, %v1016
      %v1018 = vmul.f32 %v1015, %v1017
      %v1019 = vadd.f32 %v1015, %v1018
      %vm1020 = vweird.f32 %v689
      %vm1021 = vweird.f32 %v1015
      %vm1022 = vmor %vm1020, %vm1021
      %v1023 = vsel %vm1022, %v1015, %v1019
      %v1024 = vand.u32 2147483647, %v689
      %vm1025 = vcmp.eq.f32.partialorder %v1024, 8.507059e+37
      %v1026 = vand.u32 %v689, 2147483648
      %v1027 = vor.u32 1.1754944e-38, %v1026
      %v1028 = vsel %vm1025, %v1027, %v1023
      %v1029 = vmul.f32 1.0, %v1028
      %v1030 = vrcp.pop %v690
      %v1031 = vmul.f32 %v690, %v1030
      %v1032 = vsub.f32 1.0, %v1031
      %v1033 = vmul.f32 %v1030, %v1032
      %v1034 = vadd.f32 %v1030, %v1033
      %vm1035 = vweird.f32 %v690
      %vm1036 = vweird.f32 %v1030
      %vm1037 = vmor %vm1035, %vm1036
      %v1038 = vsel %vm1037, %v1030, %v1034
      %v1039 = vand.u32 2147483647, %v690
      %vm1040 = vcmp.eq.f32.partialorder %v1039, 8.507059e+37
      %v1041 = vand.u32 %v690, 2147483648
      %v1042 = vor.u32 1.1754944e-38, %v1041
      %v1043 = vsel %vm1040, %v1042, %v1038
      %v1044 = vmul.f32 1.0, %v1043
      %v1045 = vrcp.pop %v691
      %v1046 = vmul.f32 %v691, %v1045
      %v1047 = vsub.f32 1.0, %v1046
      %v1048 = vmul.f32 %v1045, %v1047
      %v1049 = vadd.f32 %v1045, %v1048
      %vm1050 = vweird.f32 %v691
      %vm1051 = vweird.f32 %v1045
      %vm1052 = vmor %vm1050, %vm1051
      %v1053 = vsel %vm1052, %v1045, %v1049
      %v1054 = vand.u32 2147483647, %v691
      %vm1055 = vcmp.eq.f32.partialorder %v1054, 8.507059e+37
      %v1056 = vand.u32 %v691, 2147483648
      %v1057 = vor.u32 1.1754944e-38, %v1056
      %v1058 = vsel %vm1055, %v1057, %v1053
      %v1059 = vmul.f32 1.0, %v1058
      %v1060 = vrcp.pop %v692
      %v1061 = vmul.f32 %v692, %v1060
      %v1062 = vsub.f32 1.0, %v1061
      %v1063 = vmul.f32 %v1060, %v1062
      %v1064 = vadd.f32 %v1060, %v1063
      %vm1065 = vweird.f32 %v692
      %vm1066 = vweird.f32 %v1060
      %vm1067 = vmor %vm1065, %vm1066
      %v1068 = vsel %vm1067, %v1060, %v1064
      %v1069 = vand.u32 2147483647, %v692
      %vm1070 = vcmp.eq.f32.partialorder %v1069, 8.507059e+37
      %v1071 = vand.u32 %v692, 2147483648
      %v1072 = vor.u32 1.1754944e-38, %v1071
      %v1073 = vsel %vm1070, %v1072, %v1068
      %v1074 = vmul.f32 1.0, %v1073
      %v1075 = vrcp.pop %v693
      %v1076 = vmul.f32 %v693, %v1075
      %v1077 = vsub.f32 1.0, %v1076
      %v1078 = vmul.f32 %v1075, %v1077
      %v1079 = vadd.f32 %v1075, %v1078
      %vm1080 = vweird.f32 %v693
      %vm1081 = vweird.f32 %v1075
      %vm1082 = vmor %vm1080, %vm1081
      %v1083 = vsel %vm1082, %v1075, %v1079
      %v1084 = vand.u32 2147483647, %v693
      %vm1085 = vcmp.eq.f32.partialorder %v1084, 8.507059e+37
      %v1086 = vand.u32 %v693, 2147483648
      %v1087 = vor.u32 1.1754944e-38, %v1086
      %v1088 = vsel %vm1085, %v1087, %v1083
      %v1089 = vmul.f32 1.0, %v1088
      %v1090 = vrcp.pop %v694
      %v1091 = vmul.f32 %v694, %v1090
      %v1092 = vsub.f32 1.0, %v1091
      %v1093 = vmul.f32 %v1090, %v1092
      %v1094 = vadd.f32 %v1090, %v1093
      %vm1095 = vweird.f32 %v694
      %vm1096 = vweird.f32 %v1090
      %vm1097 = vmor %vm1095, %vm1096
      %v1098 = vsel %vm1097, %v1090, %v1094
      %v1099 = vand.u32 2147483647, %v694
      %vm1100 = vcmp.eq.f32.partialorder %v1099, 8.507059e+37
      %v1101 = vand.u32 %v694, 2147483648
      %v1102 = vor.u32 1.1754944e-38, %v1101
      %v1103 = vsel %vm1100, %v1102, %v1098
      %v1104 = vmul.f32 1.0, %v1103
      %v1105 = vrcp.pop %v695
      %v1106 = vmul.f32 %v695, %v1105
      %v1107 = vsub.f32 1.0, %v1106
      %v1108 = vmul.f32 %v1105, %v1107
      %v1109 = vadd.f32 %v1105, %v1108
      %vm1110 = vweird.f32 %v695
      %vm1111 = vweird.f32 %v1105
      %vm1112 = vmor %vm1110, %vm1111
      %v1113 = vsel %vm1112, %v1105, %v1109
      %v1114 = vand.u32 2147483647, %v695
      %vm1115 = vcmp.eq.f32.partialorder %v1114, 8.507059e+37
      %v1116 = vand.u32 %v695, 2147483648
      %v1117 = vor.u32 1.1754944e-38, %v1116
      %v1118 = vsel %vm1115, %v1117, %v1113
      %v1119 = vmul.f32 1.0, %v1118
      %v1120 = vrcp.pop %v696
      %v1121 = vmul.f32 %v696, %v1120
      %v1122 = vsub.f32 1.0, %v1121
      %v1123 = vmul.f32 %v1120, %v1122
      %v1124 = vadd.f32 %v1120, %v1123
      %vm1125 = vweird.f32 %v696
      %vm1126 = vweird.f32 %v1120
      %vm1127 = vmor %vm1125, %vm1126
      %v1128 = vsel %vm1127, %v1120, %v1124
      %v1129 = vand.u32 2147483647, %v696
      %vm1130 = vcmp.eq.f32.partialorder %v1129, 8.507059e+37
      %v1131 = vand.u32 %v696, 2147483648
      %v1132 = vor.u32 1.1754944e-38, %v1131
      %v1133 = vsel %vm1130, %v1132, %v1128
      %v1134 = vmul.f32 1.0, %v1133
      %v1135 = vrcp.pop %v697
      %v1136 = vmul.f32 %v697, %v1135
      %v1137 = vsub.f32 1.0, %v1136
      %v1138 = vmul.f32 %v1135, %v1137
      %v1139 = vadd.f32 %v1135, %v1138
      %vm1140 = vweird.f32 %v697
      %vm1141 = vweird.f32 %v1135
      %vm1142 = vmor %vm1140, %vm1141
      %v1143 = vsel %vm1142, %v1135, %v1139
      %v1144 = vand.u32 2147483647, %v697
      %vm1145 = vcmp.eq.f32.partialorder %v1144, 8.507059e+37
      %v1146 = vand.u32 %v697, 2147483648
      %v1147 = vor.u32 1.1754944e-38, %v1146
      %v1148 = vsel %vm1145, %v1147, %v1143
      %v1149 = vmul.f32 1.0, %v1148
      %v1150 = vrcp.pop %v698
      %v1151 = vmul.f32 %v698, %v1150
      %v1152 = vsub.f32 1.0, %v1151
      %v1153 = vmul.f32 %v1150, %v1152
      %v1154 = vadd.f32 %v1150, %v1153
      %vm1155 = vweird.f32 %v698
      %vm1156 = vweird.f32 %v1150
      %vm1157 = vmor %vm1155, %vm1156
      %v1158 = vsel %vm1157, %v1150, %v1154
      %v1159 = vand.u32 2147483647, %v698
      %vm1160 = vcmp.eq.f32.partialorder %v1159, 8.507059e+37
      %v1161 = vand.u32 %v698, 2147483648
      %v1162 = vor.u32 1.1754944e-38, %v1161
      %v1163 = vsel %vm1160, %v1162, %v1158
      %v1164 = vmul.f32 1.0, %v1163
      %v1165 = vrcp.pop %v699
      %v1166 = vmul.f32 %v699, %v1165
      %v1167 = vsub.f32 1.0, %v1166
      %v1168 = vmul.f32 %v1165, %v1167
      %v1169 = vadd.f32 %v1165, %v1168
      %vm1170 = vweird.f32 %v699
      %vm1171 = vweird.f32 %v1165
      %vm1172 = vmor %vm1170, %vm1171
      %v1173 = vsel %vm1172, %v1165, %v1169
      %v1174 = vand.u32 2147483647, %v699
      %vm1175 = vcmp.eq.f32.partialorder %v1174, 8.507059e+37
      %v1176 = vand.u32 %v699, 2147483648
      %v1177 = vor.u32 1.1754944e-38, %v1176
      %v1178 = vsel %vm1175, %v1177, %v1173
      %v1179 = vmul.f32 1.0, %v1178
      %v1180 = vmul.f32 %v540, %v714
      %v1181 = vmul.f32 %v541, %v729
      %v1182 = vmul.f32 %v542, %v744
      %v1183 = vmul.f32 %v543, %v759
      %v1184 = vmul.f32 %v544, %v774
      %v1185 = vmul.f32 %v545, %v789
      %v1186 = vmul.f32 %v546, %v804
      %v1187 = vmul.f32 %v547, %v819
      %v1188 = vmul.f32 %v548, %v834
      %v1189 = vmul.f32 %v549, %v849
      %v1190 = vmul.f32 %v550, %v864
      %v1191 = vmul.f32 %v551, %v879
      %v1192 = vmul.f32 %v552, %v894
      %v1193 = vmul.f32 %v553, %v909
      %v1194 = vmul.f32 %v554, %v924
      %v1195 = vmul.f32 %v555, %v939
      %v1196 = vmul.f32 %v556, %v954
      %v1197 = vmul.f32 %v557, %v969
      %v1198 = vmul.f32 %v558, %v984
      %v1199 = vmul.f32 %v559, %v999
      %v1200 = vmul.f32 %v560, %v1014
      %v1201 = vmul.f32 %v561, %v1029
      %v1202 = vmul.f32 %v562, %v1044
      %v1203 = vmul.f32 %v563, %v1059
      %v1204 = vmul.f32 %v564, %v1074
      %v1205 = vmul.f32 %v565, %v1089
      %v1206 = vmul.f32 %v566, %v1104
      %v1207 = vmul.f32 %v567, %v1119
      %v1208 = vmul.f32 %v568, %v1134
      %v1209 = vmul.f32 %v569, %v1149
      %v1210 = vmul.f32 %v570, %v1164
      %v1211 = vmul.f32 %v571, %v1179
      %v1212 = vld [vmem:[#allocation2] sm:$0x1]
      %v1213 = vadd.f32 %v1180, %v1181
      %v1214 = vadd.f32 %v1213, %v1182
      %v1215 = vadd.f32 %v1214, %v1183
      %v1216 = vadd.f32 %v1215, %v1184
      %v1217 = vadd.f32 %v1216, %v1185
      %v1218 = vadd.f32 %v1217, %v1186
      %v1219 = vadd.f32 %v1218, %v1187
      %v1220 = vadd.f32 %v1219, %v1188
      %v1221 = vadd.f32 %v1220, %v1189
      %v1222 = vadd.f32 %v1221, %v1190
      %v1223 = vadd.f32 %v1222, %v1191
      %v1224 = vadd.f32 %v1223, %v1192
      %v1225 = vadd.f32 %v1224, %v1193
      %v1226 = vadd.f32 %v1225, %v1194
      %v1227 = vadd.f32 %v1226, %v1195
      %v1228 = vadd.f32 %v1227, %v1196
      %v1229 = vadd.f32 %v1228, %v1197
      %v1230 = vadd.f32 %v1229, %v1198
      %v1231 = vadd.f32 %v1230, %v1199
      %v1232 = vadd.f32 %v1231, %v1200
      %v1233 = vadd.f32 %v1232, %v1201
      %v1234 = vadd.f32 %v1233, %v1202
      %v1235 = vadd.f32 %v1234, %v1203
      %v1236 = vadd.f32 %v1235, %v1204
      %v1237 = vadd.f32 %v1236, %v1205
      %v1238 = vadd.f32 %v1237, %v1206
      %v1239 = vadd.f32 %v1238, %v1207
      %v1240 = vadd.f32 %v1239, %v1208
      %v1241 = vadd.f32 %v1240, %v1209
      %v1242 = vadd.f32 %v1241, %v1210
      %v1243 = vadd.f32 %v1242, %v1211
      %v1244 = vrot.slane %v1243, 4
      %v1245 = vadd.f32 %v1243, %v1244
      %v1246 = vrot.slane %v1245, 2
      %v1247 = vadd.f32 %v1245, %v1246
      %v1248 = vrot.slane %v1247, 1
      %v1249 = vadd.f32 %v1247, %v1248
      %v1250 = vadd.f32 %v1212, %v1249
      %1251 = vst [vmem:[#allocation2] sm:$0x1] %v1250
      // Predicated region
      $region41: #{pose_efficientnet_forward.2} parent=35 // pred_check
        %p1252 = pneg %p223
      $region42: #{pose_efficientnet_forward.2} parent=35 // pred_check_branch
        %1254 = sbr.rel (%p1252) target = $region44
      $region43: #{pose_efficientnet_forward.2} parent=35 // pred_region
        %v1255 = vld [vmem:[#allocation2] sm:$0x1]
        %v1256 = vmul.f32 %v1255, 0.00390625
        %1257 = vst [vmem:[%s221] sm:$0x1] %v1256
      $region44: #{pose_efficientnet_forward.2} parent=35 // pred_fallthru
        _
      %p1258 = scmp.lt.s32.totalorder %s19, 1
      %s1259 = scalar_select %p1258, %s19, 1
      %s1260 = scalar_lea.vmem %s4, %s1259
      // Predicated region
      $region45: #{pose_efficientnet_forward.2} parent=35 // pred_check
        %p1261 = pneg %p136
      $region46: #{pose_efficientnet_forward.2} parent=35 // pred_check_branch
        %1263 = sbr.rel (%p1261) target = $region48
      $region47: #{pose_efficientnet_forward.2} parent=35 // pred_region
        _
      $region48: #{pose_efficientnet_forward.2} parent=35 // pred_fallthru
        _
    $region36: #{pose_efficientnet_forward.2} parent=5 // pred_fallthru
      _
    %p1264 = scmp.le.s32.totalorder 2, %s10
    // Predicated region
    $region49: #{pose_efficientnet_forward.2} parent=5 // pred_check
      %p1265 = pneg %p1264
    $region50: #{pose_efficientnet_forward.2} parent=5 // pred_check_branch
      %1267 = sbr.rel (%p1265) target = $region52
    $region51: #{pose_efficientnet_forward.2} parent=5 // pred_region
      %s1268 = ssub.s32 %s10, 2
      // Predicated region
      $region53: #{pose_efficientnet_forward.2} parent=51 // pred_check
        %p1269 = pneg %p142
      $region54: #{pose_efficientnet_forward.2} parent=51 // pred_check_branch
        %1271 = sbr.rel (%p1269) target = $region56
      $region55: #{pose_efficientnet_forward.2} parent=51 // pred_region
        %p1272 = scmp.lt.s32.totalorder %s21, 1
        %s1273 = scalar_select %p1272, %s21, 1
        %s1274 = scalar_lea.vmem %s4, %s1273
      $region56: #{pose_efficientnet_forward.2} parent=51 // pred_fallthru
        _
    $region52: #{pose_efficientnet_forward.2} parent=5 // pred_fallthru
      _
  $region6: #{pose_efficientnet_forward.2} parent=0 // loop_footer
    %s14 = sadd.s32 1, %s10
  $region7: #{pose_efficientnet_forward.2} parent=0 // loop_footer_branch
    %9 = sbr.rel target = $region3
  $region8: #{pose_efficientnet_forward.2} parent=0 // loop_exit
    _

// kernel: pose_efficientnet_forward.3
$region0: #{pose_efficientnet_forward.3}
  #allocation0 [shape = 'u32[]', space=smem, size = 0x4, offset = 0x4, fixed_abs, tag = 'smem constant byte address 0x4 - core index']
  #allocation1 [shape = 'u32[72,128]{1,0:T(1,128)}', space=vmem, size = 0x9000, scoped, tag = 'internal scratch']
  %s0 = inlined_call_operand.vmem [shape: f32[2,128], index: 0, kind: input, shape index: {}]
  %s1 = inlined_call_operand.vmem [shape: bf16[128,1024], index: 1, kind: input, shape index: {}]
  %s2 = inlined_call_operand.vmem [shape: f32[1,1024], index: 2, kind: input, shape index: {}]
  %s3 = inlined_call_operand.vmem [shape: f32[1,1024], index: 3, kind: input, shape index: {}]
  %s4 = inlined_call_operand.vmem [shape: f32[1,1024], index: 4, kind: input, shape index: {}]
  %s5 = inlined_call_operand.vmem [shape: f32[1024,7], index: 5, kind: input, shape index: {}]
  %s6 = inlined_call_operand.vmem [shape: f32[1,7], index: 6, kind: input, shape index: {}]
  %s7 = inlined_call_operand.hbm [shape: f32[2,7], index: 7, kind: output, shape index: {}]
  %s8 = sld [smem:[#allocation0]]
  $region38: #{pose_efficientnet_forward.3} parent=0
    _
  %s10 = ssub.s32 1, %s8
  %s11 = scalar_select 0, %s10, %s8
  $region1: #{pose_efficientnet_forward.3} parent=0
    #allocation2 [shape = 'u8[1024]{0}', space=vmem, size = 0x400, scoped, tag = 'output window, operand 0, single buffered']
    #allocation3 [shape = 's32[1]{0}', space=sflag, size = 0x4, scoped, tag = 'scoped memory for pose_efficientnet_forward.3']
    %12 = vsyncpa [#allocation3], 0
    // Predicated region
    $region2: #{pose_efficientnet_forward.3} parent=1 // pred_check
      _
    $region3: #{pose_efficientnet_forward.3} parent=1 // pred_check_branch
      %14 = sbr.rel (0) target = $region5
    $region4: #{pose_efficientnet_forward.3} parent=1 // pred_region
      _
    $region5: #{pose_efficientnet_forward.3} parent=1 // pred_fallthru
      _
    // Predicated region
    $region6: #{pose_efficientnet_forward.3} parent=1 // pred_check
      _
    $region7: #{pose_efficientnet_forward.3} parent=1 // pred_check_branch
      %16 = sbr.rel (0) target = $region9
    $region8: #{pose_efficientnet_forward.3} parent=1 // pred_region
      _
    $region9: #{pose_efficientnet_forward.3} parent=1 // pred_fallthru
      _
    // Predicated region
    $region10: #{pose_efficientnet_forward.3} parent=1 // pred_check
      _
    $region11: #{pose_efficientnet_forward.3} parent=1 // pred_check_branch
      %18 = sbr.rel (0) target = $region13
    $region12: #{pose_efficientnet_forward.3} parent=1 // pred_region
      _
    $region13: #{pose_efficientnet_forward.3} parent=1 // pred_fallthru
      _
    // Predicated region
    $region14: #{pose_efficientnet_forward.3} parent=1 // pred_check
      _
    $region15: #{pose_efficientnet_forward.3} parent=1 // pred_check_branch
      %20 = sbr.rel (0) target = $region17
    $region16: #{pose_efficientnet_forward.3} parent=1 // pred_region
      _
    $region17: #{pose_efficientnet_forward.3} parent=1 // pred_fallthru
      _
    // Predicated region
    $region18: #{pose_efficientnet_forward.3} parent=1 // pred_check
      _
    $region19: #{pose_efficientnet_forward.3} parent=1 // pred_check_branch
      %22 = sbr.rel (0) target = $region21
    $region20: #{pose_efficientnet_forward.3} parent=1 // pred_region
      _
    $region21: #{pose_efficientnet_forward.3} parent=1 // pred_fallthru
      _
    // Predicated region
    $region22: #{pose_efficientnet_forward.3} parent=1 // pred_check
      _
    $region23: #{pose_efficientnet_forward.3} parent=1 // pred_check_branch
      %24 = sbr.rel (0) target = $region25
    $region24: #{pose_efficientnet_forward.3} parent=1 // pred_region
      _
    $region25: #{pose_efficientnet_forward.3} parent=1 // pred_fallthru
      _
    // Predicated region
    $region26: #{pose_efficientnet_forward.3} parent=1 // pred_check
      _
    $region27: #{pose_efficientnet_forward.3} parent=1 // pred_check_branch
      %26 = sbr.rel (0) target = $region29
    $region28: #{pose_efficientnet_forward.3} parent=1 // pred_region
      _
    $region29: #{pose_efficientnet_forward.3} parent=1 // pred_fallthru
      _
    %v27 = vld [vmem:[%s0] sm:$0x3]
    %v28 = vpack.c.bf16 %v27, %v27
    %v29 = vld [vmem:[%s1] sm:$0xff]
    %v30 = vld [vmem:[%s1 + $0x8] sm:$0xff]
    %v31 = vld [vmem:[%s1 + $0x10] sm:$0xff]
    %v32 = vld [vmem:[%s1 + $0x18] sm:$0xff]
    %v33 = vld [vmem:[%s1 + $0x20] sm:$0xff]
    %v34 = vld [vmem:[%s1 + $0x28] sm:$0xff]
    %v35 = vld [vmem:[%s1 + $0x30] sm:$0xff]
    %v36 = vld [vmem:[%s1 + $0x38] sm:$0xff]
    %v37 = vld [vmem:[%s1 + $0x40] sm:$0xff]
    %v38 = vld [vmem:[%s1 + $0x48] sm:$0xff]
    %v39 = vld [vmem:[%s1 + $0x50] sm:$0xff]
    %v40 = vld [vmem:[%s1 + $0x58] sm:$0xff]
    %v41 = vld [vmem:[%s1 + $0x60] sm:$0xff]
    %v42 = vld [vmem:[%s1 + $0x68] sm:$0xff]
    %v43 = vld [vmem:[%s1 + $0x70] sm:$0xff]
    %v44 = vld [vmem:[%s1 + $0x78] sm:$0xff]
    %v45 = vld [vmem:[%s1 + $0x80] sm:$0xff]
    %v46 = vld [vmem:[%s1 + $0x88] sm:$0xff]
    %v47 = vld [vmem:[%s1 + $0x90] sm:$0xff]
    %v48 = vld [vmem:[%s1 + $0x98] sm:$0xff]
    %v49 = vld [vmem:[%s1 + $0xa0] sm:$0xff]
    %v50 = vld [vmem:[%s1 + $0xa8] sm:$0xff]
    %v51 = vld [vmem:[%s1 + $0xb0] sm:$0xff]
    %v52 = vld [vmem:[%s1 + $0xb8] sm:$0xff]
    %v53 = vld [vmem:[%s1 + $0xc0] sm:$0xff]
    %v54 = vld [vmem:[%s1 + $0xc8] sm:$0xff]
    %v55 = vld [vmem:[%s1 + $0xd0] sm:$0xff]
    %v56 = vld [vmem:[%s1 + $0xd8] sm:$0xff]
    %v57 = vld [vmem:[%s1 + $0xe0] sm:$0xff]
    %v58 = vld [vmem:[%s1 + $0xe8] sm:$0xff]
    %v59 = vld [vmem:[%s1 + $0xf0] sm:$0xff]
    %v60 = vld [vmem:[%s1 + $0xf8] sm:$0xff]
    %v61 = vld [vmem:[%s1 + $0x100] sm:$0xff]
    %v62 = vld [vmem:[%s1 + $0x108] sm:$0xff]
    %v63 = vld [vmem:[%s1 + $0x110] sm:$0xff]
    %v64 = vld [vmem:[%s1 + $0x118] sm:$0xff]
    %v65 = vld [vmem:[%s1 + $0x120] sm:$0xff]
    %v66 = vld [vmem:[%s1 + $0x128] sm:$0xff]
    %v67 = vld [vmem:[%s1 + $0x130] sm:$0xff]
    %v68 = vld [vmem:[%s1 + $0x138] sm:$0xff]
    %v69 = vld [vmem:[%s1 + $0x140] sm:$0xff]
    %v70 = vld [vmem:[%s1 + $0x148] sm:$0xff]
    %v71 = vld [vmem:[%s1 + $0x150] sm:$0xff]
    %v72 = vld [vmem:[%s1 + $0x158] sm:$0xff]
    %v73 = vld [vmem:[%s1 + $0x160] sm:$0xff]
    %v74 = vld [vmem:[%s1 + $0x168] sm:$0xff]
    %v75 = vld [vmem:[%s1 + $0x170] sm:$0xff]
    %v76 = vld [vmem:[%s1 + $0x178] sm:$0xff]
    %v77 = vld [vmem:[%s1 + $0x180] sm:$0xff]
    %v78 = vld [vmem:[%s1 + $0x188] sm:$0xff]
    %v79 = vld [vmem:[%s1 + $0x190] sm:$0xff]
    %v80 = vld [vmem:[%s1 + $0x198] sm:$0xff]
    %v81 = vld [vmem:[%s1 + $0x1a0] sm:$0xff]
    %v82 = vld [vmem:[%s1 + $0x1a8] sm:$0xff]
    %v83 = vld [vmem:[%s1 + $0x1b0] sm:$0xff]
    %v84 = vld [vmem:[%s1 + $0x1b8] sm:$0xff]
    %v85 = vld [vmem:[%s1 + $0x1c0] sm:$0xff]
    %v86 = vld [vmem:[%s1 + $0x1c8] sm:$0xff]
    %v87 = vld [vmem:[%s1 + $0x1d0] sm:$0xff]
    %v88 = vld [vmem:[%s1 + $0x1d8] sm:$0xff]
    %v89 = vld [vmem:[%s1 + $0x1e0] sm:$0xff]
    %v90 = vld [vmem:[%s1 + $0x1e8] sm:$0xff]
    %v91 = vld [vmem:[%s1 + $0x1f0] sm:$0xff]
    %v92 = vld [vmem:[%s1 + $0x1f8] sm:$0xff]
    %v93 = vld [vmem:[%s2] sm:$0xff]
    %v95 = vperm.slane %v93, 0
    %v96 = vperm.slane %v93, 1
    %v97 = vperm.slane %v93, 2
    %v98 = vperm.slane %v93, 3
    %v99 = vperm.slane %v93, 4
    %v100 = vperm.slane %v93, 5
    %v101 = vperm.slane %v93, 6
    %v102 = vperm.slane %v93, 7
    %v175 = vunpack.c.l.b16 %v29
    %v176 = vunpack.c.h.b16 %v29
    %v177 = vunpack.c.l.b16 %v30
    %v178 = vunpack.c.h.b16 %v30
    %v179 = vunpack.c.l.b16 %v31
    %v180 = vunpack.c.h.b16 %v31
    %v181 = vunpack.c.l.b16 %v32
    %v182 = vunpack.c.h.b16 %v32
    %v183 = vunpack.c.l.b16 %v33
    %v184 = vunpack.c.h.b16 %v33
    %v185 = vunpack.c.l.b16 %v34
    %v186 = vunpack.c.h.b16 %v34
    %v187 = vunpack.c.l.b16 %v35
    %v188 = vunpack.c.h.b16 %v35
    %v189 = vunpack.c.l.b16 %v36
    %v190 = vunpack.c.h.b16 %v36
    %v191 = vunpack.c.l.b16 %v37
    %v192 = vunpack.c.h.b16 %v37
    %v193 = vunpack.c.l.b16 %v38
    %v194 = vunpack.c.h.b16 %v38
    %v195 = vunpack.c.l.b16 %v39
    %v196 = vunpack.c.h.b16 %v39
    %v197 = vunpack.c.l.b16 %v40
    %v198 = vunpack.c.h.b16 %v40
    %v199 = vunpack.c.l.b16 %v41
    %v200 = vunpack.c.h.b16 %v41
    %v201 = vunpack.c.l.b16 %v42
    %v202 = vunpack.c.h.b16 %v42
    %v203 = vunpack.c.l.b16 %v43
    %v204 = vunpack.c.h.b16 %v43
    %v205 = vunpack.c.l.b16 %v44
    %v206 = vunpack.c.h.b16 %v44
    %v207 = vunpack.c.l.b16 %v45
    %v208 = vunpack.c.h.b16 %v45
    %v209 = vunpack.c.l.b16 %v46
    %v210 = vunpack.c.h.b16 %v46
    %v211 = vunpack.c.l.b16 %v47
    %v212 = vunpack.c.h.b16 %v47
    %v213 = vunpack.c.l.b16 %v48
    %v214 = vunpack.c.h.b16 %v48
    %v215 = vunpack.c.l.b16 %v49
    %v216 = vunpack.c.h.b16 %v49
    %v217 = vunpack.c.l.b16 %v50
    %v218 = vunpack.c.h.b16 %v50
    %v219 = vunpack.c.l.b16 %v51
    %v220 = vunpack.c.h.b16 %v51
    %v221 = vunpack.c.l.b16 %v52
    %v222 = vunpack.c.h.b16 %v52
    %v223 = vunpack.c.l.b16 %v53
    %v224 = vunpack.c.h.b16 %v53
    %v225 = vunpack.c.l.b16 %v54
    %v226 = vunpack.c.h.b16 %v54
    %v227 = vunpack.c.l.b16 %v55
    %v228 = vunpack.c.h.b16 %v55
    %v229 = vunpack.c.l.b16 %v56
    %v230 = vunpack.c.h.b16 %v56
    %v231 = vunpack.c.l.b16 %v57
    %v232 = vunpack.c.h.b16 %v57
    %v233 = vunpack.c.l.b16 %v58
    %v234 = vunpack.c.h.b16 %v58
    %v235 = vunpack.c.l.b16 %v59
    %v236 = vunpack.c.h.b16 %v59
    %v237 = vunpack.c.l.b16 %v60
    %v238 = vunpack.c.h.b16 %v60
    %v239 = vunpack.c.l.b16 %v61
    %v240 = vunpack.c.h.b16 %v61
    %v241 = vunpack.c.l.b16 %v62
    %v242 = vunpack.c.h.b16 %v62
    %v243 = vunpack.c.l.b16 %v63
    %v244 = vunpack.c.h.b16 %v63
    %v245 = vunpack.c.l.b16 %v64
    %v246 = vunpack.c.h.b16 %v64
    %v247 = vunpack.c.l.b16 %v65
    %v248 = vunpack.c.h.b16 %v65
    %v249 = vunpack.c.l.b16 %v66
    %v250 = vunpack.c.h.b16 %v66
    %v251 = vunpack.c.l.b16 %v67
    %v252 = vunpack.c.h.b16 %v67
    %v253 = vunpack.c.l.b16 %v68
    %v254 = vunpack.c.h.b16 %v68
    %v255 = vunpack.c.l.b16 %v69
    %v256 = vunpack.c.h.b16 %v69
    %v257 = vunpack.c.l.b16 %v70
    %v258 = vunpack.c.h.b16 %v70
    %v259 = vunpack.c.l.b16 %v71
    %v260 = vunpack.c.h.b16 %v71
    %v261 = vunpack.c.l.b16 %v72
    %v262 = vunpack.c.h.b16 %v72
    %v263 = vunpack.c.l.b16 %v73
    %v264 = vunpack.c.h.b16 %v73
    %v265 = vunpack.c.l.b16 %v74
    %v266 = vunpack.c.h.b16 %v74
    %v267 = vunpack.c.l.b16 %v75
    %v268 = vunpack.c.h.b16 %v75
    %v269 = vunpack.c.l.b16 %v76
    %v270 = vunpack.c.h.b16 %v76
    %v271 = vunpack.c.l.b16 %v77
    %v272 = vunpack.c.h.b16 %v77
    %v273 = vunpack.c.l.b16 %v78
    %v274 = vunpack.c.h.b16 %v78
    %v275 = vunpack.c.l.b16 %v79
    %v276 = vunpack.c.h.b16 %v79
    %v277 = vunpack.c.l.b16 %v80
    %v278 = vunpack.c.h.b16 %v80
    %v279 = vunpack.c.l.b16 %v81
    %v280 = vunpack.c.h.b16 %v81
    %v281 = vunpack.c.l.b16 %v82
    %v282 = vunpack.c.h.b16 %v82
    %v283 = vunpack.c.l.b16 %v83
    %v284 = vunpack.c.h.b16 %v83
    %v285 = vunpack.c.l.b16 %v84
    %v286 = vunpack.c.h.b16 %v84
    %v287 = vunpack.c.l.b16 %v85
    %v288 = vunpack.c.h.b16 %v85
    %v289 = vunpack.c.l.b16 %v86
    %v290 = vunpack.c.h.b16 %v86
    %v291 = vunpack.c.l.b16 %v87
    %v292 = vunpack.c.h.b16 %v87
    %v293 = vunpack.c.l.b16 %v88
    %v294 = vunpack.c.h.b16 %v88
    %v295 = vunpack.c.l.b16 %v89
    %v296 = vunpack.c.h.b16 %v89
    %v297 = vunpack.c.l.b16 %v90
    %v298 = vunpack.c.h.b16 %v90
    %v299 = vunpack.c.l.b16 %v91
    %v300 = vunpack.c.h.b16 %v91
    %v301 = vunpack.c.l.b16 %v92
    %v302 = vunpack.c.h.b16 %v92
    %v303 = vpack.c.b16 %v183, %v175
    %v304 = vpack.c.b16 %v184, %v176
    %v305 = vpack.c.b16 %v185, %v177
    %v306 = vpack.c.b16 %v186, %v178
    %v307 = vpack.c.b16 %v187, %v179
    %v308 = vpack.c.b16 %v188, %v180
    %v309 = vpack.c.b16 %v189, %v181
    %v310 = vpack.c.b16 %v190, %v182
    %v311 = vpack.c.b16 %v199, %v191
    %v312 = vpack.c.b16 %v200, %v192
    %v313 = vpack.c.b16 %v201, %v193
    %v314 = vpack.c.b16 %v202, %v194
    %v315 = vpack.c.b16 %v203, %v195
    %v316 = vpack.c.b16 %v204, %v196
    %v317 = vpack.c.b16 %v205, %v197
    %v318 = vpack.c.b16 %v206, %v198
    %v319 = vpack.c.b16 %v215, %v207
    %v320 = vpack.c.b16 %v216, %v208
    %v321 = vpack.c.b16 %v217, %v209
    %v322 = vpack.c.b16 %v218, %v210
    %v323 = vpack.c.b16 %v219, %v211
    %v324 = vpack.c.b16 %v220, %v212
    %v325 = vpack.c.b16 %v221, %v213
    %v326 = vpack.c.b16 %v222, %v214
    %v327 = vpack.c.b16 %v231, %v223
    %v328 = vpack.c.b16 %v232, %v224
    %v329 = vpack.c.b16 %v233, %v225
    %v330 = vpack.c.b16 %v234, %v226
    %v331 = vpack.c.b16 %v235, %v227
    %v332 = vpack.c.b16 %v236, %v228
    %v333 = vpack.c.b16 %v237, %v229
    %v334 = vpack.c.b16 %v238, %v230
    %v335 = vpack.c.b16 %v247, %v239
    %v336 = vpack.c.b16 %v248, %v240
    %v337 = vpack.c.b16 %v249, %v241
    %v338 = vpack.c.b16 %v250, %v242
    %v339 = vpack.c.b16 %v251, %v243
    %v340 = vpack.c.b16 %v252, %v244
    %v341 = vpack.c.b16 %v253, %v245
    %v342 = vpack.c.b16 %v254, %v246
    %v343 = vpack.c.b16 %v263, %v255
    %v344 = vpack.c.b16 %v264, %v256
    %v345 = vpack.c.b16 %v265, %v257
    %v346 = vpack.c.b16 %v266, %v258
    %v347 = vpack.c.b16 %v267, %v259
    %v348 = vpack.c.b16 %v268, %v260
    %v349 = vpack.c.b16 %v269, %v261
    %v350 = vpack.c.b16 %v270, %v262
    %v351 = vpack.c.b16 %v279, %v271
    %v352 = vpack.c.b16 %v280, %v272
    %v353 = vpack.c.b16 %v281, %v273
    %v354 = vpack.c.b16 %v282, %v274
    %v355 = vpack.c.b16 %v283, %v275
    %v356 = vpack.c.b16 %v284, %v276
    %v357 = vpack.c.b16 %v285, %v277
    %v358 = vpack.c.b16 %v286, %v278
    %v359 = vpack.c.b16 %v295, %v287
    %v360 = vpack.c.b16 %v296, %v288
    %v361 = vpack.c.b16 %v297, %v289
    %v362 = vpack.c.b16 %v298, %v290
    %v363 = vpack.c.b16 %v299, %v291
    %v364 = vpack.c.b16 %v300, %v292
    %v365 = vpack.c.b16 %v301, %v293
    %v366 = vpack.c.b16 %v302, %v294
    %431 = vmatpush.bf16.msra.mxu0 %v359
    %432 = vmatpush.bf16.msra.mxu0 %v351
    %433 = vmatpush.bf16.msra.mxu0 %v343
    %434 = vmatpush.bf16.msra.mxu0 %v335
    %435 = vmatpush.bf16.msra.mxu0 %v327
    %436 = vmatpush.bf16.msra.mxu0 %v319
    %437 = vmatpush.bf16.msra.mxu0 %v311
    %438 = vmatpush.bf16.msra.mxu0 %v303
    %439 = vmatmul.bf16.gmra.mxu0 %v28
    %v440 = vpop.f32.mrf.mxu0
    %v441 = vadd.f32 %v95, %v440
    %v442 = vpop.f32.mrf.mxu0
    %443 = vdwg.mxu0
    %444 = vmatpush.bf16.msra.mxu0 %v360
    %445 = vmatpush.bf16.msra.mxu0 %v352
    %446 = vmatpush.bf16.msra.mxu0 %v344
    %447 = vmatpush.bf16.msra.mxu0 %v336
    %448 = vmatpush.bf16.msra.mxu0 %v328
    %449 = vmatpush.bf16.msra.mxu0 %v320
    %450 = vmatpush.bf16.msra.mxu0 %v312
    %451 = vmatpush.bf16.msra.mxu0 %v304
    %452 = vmatmul.bf16.gmra.mxu0 %v28
    %v453 = vpop.f32.mrf.mxu0
    %v454 = vadd.f32 %v96, %v453
    %v455 = vpop.f32.mrf.mxu0
    %456 = vdwg.mxu0
    %457 = vmatpush.bf16.msra.mxu0 %v361
    %458 = vmatpush.bf16.msra.mxu0 %v353
    %459 = vmatpush.bf16.msra.mxu0 %v345
    %460 = vmatpush.bf16.msra.mxu0 %v337
    %461 = vmatpush.bf16.msra.mxu0 %v329
    %462 = vmatpush.bf16.msra.mxu0 %v321
    %463 = vmatpush.bf16.msra.mxu0 %v313
    %464 = vmatpush.bf16.msra.mxu0 %v305
    %465 = vmatmul.bf16.gmra.mxu0 %v28
    %v466 = vpop.f32.mrf.mxu0
    %v467 = vadd.f32 %v97, %v466
    %v468 = vpop.f32.mrf.mxu0
    %469 = vdwg.mxu0
    %470 = vmatpush.bf16.msra.mxu0 %v362
    %471 = vmatpush.bf16.msra.mxu0 %v354
    %472 = vmatpush.bf16.msra.mxu0 %v346
    %473 = vmatpush.bf16.msra.mxu0 %v338
    %474 = vmatpush.bf16.msra.mxu0 %v330
    %475 = vmatpush.bf16.msra.mxu0 %v322
    %476 = vmatpush.bf16.msra.mxu0 %v314
    %477 = vmatpush.bf16.msra.mxu0 %v306
    %478 = vmatmul.bf16.gmra.mxu0 %v28
    %v479 = vpop.f32.mrf.mxu0
    %v480 = vadd.f32 %v98, %v479
    %v481 = vpop.f32.mrf.mxu0
    %482 = vdwg.mxu0
    %483 = vmatpush.bf16.msra.mxu0 %v363
    %484 = vmatpush.bf16.msra.mxu0 %v355
    %485 = vmatpush.bf16.msra.mxu0 %v347
    %486 = vmatpush.bf16.msra.mxu0 %v339
    %487 = vmatpush.bf16.msra.mxu0 %v331
    %488 = vmatpush.bf16.msra.mxu0 %v323
    %489 = vmatpush.bf16.msra.mxu0 %v315
    %490 = vmatpush.bf16.msra.mxu0 %v307
    %491 = vmatmul.bf16.gmra.mxu0 %v28
    %v492 = vpop.f32.mrf.mxu0
    %v493 = vadd.f32 %v99, %v492
    %v494 = vpop.f32.mrf.mxu0
    %495 = vdwg.mxu0
    %496 = vmatpush.bf16.msra.mxu0 %v364
    %497 = vmatpush.bf16.msra.mxu0 %v356
    %498 = vmatpush.bf16.msra.mxu0 %v348
    %499 = vmatpush.bf16.msra.mxu0 %v340
    %500 = vmatpush.bf16.msra.mxu0 %v332
    %501 = vmatpush.bf16.msra.mxu0 %v324
    %502 = vmatpush.bf16.msra.mxu0 %v316
    %503 = vmatpush.bf16.msra.mxu0 %v308
    %504 = vmatmul.bf16.gmra.mxu0 %v28
    %v505 = vpop.f32.mrf.mxu0
    %v506 = vadd.f32 %v100, %v505
    %v507 = vpop.f32.mrf.mxu0
    %508 = vdwg.mxu0
    %509 = vmatpush.bf16.msra.mxu0 %v365
    %510 = vmatpush.bf16.msra.mxu0 %v357
    %511 = vmatpush.bf16.msra.mxu0 %v349
    %512 = vmatpush.bf16.msra.mxu0 %v341
    %513 = vmatpush.bf16.msra.mxu0 %v333
    %514 = vmatpush.bf16.msra.mxu0 %v325
    %515 = vmatpush.bf16.msra.mxu0 %v317
    %516 = vmatpush.bf16.msra.mxu0 %v309
    %517 = vmatmul.bf16.gmra.mxu0 %v28
    %v518 = vpop.f32.mrf.mxu0
    %v519 = vadd.f32 %v101, %v518
    %v520 = vpop.f32.mrf.mxu0
    %521 = vdwg.mxu0
    %522 = vmatpush.bf16.msra.mxu0 %v366
    %523 = vmatpush.bf16.msra.mxu0 %v358
    %524 = vmatpush.bf16.msra.mxu0 %v350
    %525 = vmatpush.bf16.msra.mxu0 %v342
    %526 = vmatpush.bf16.msra.mxu0 %v334
    %527 = vmatpush.bf16.msra.mxu0 %v326
    %528 = vmatpush.bf16.msra.mxu0 %v318
    %529 = vmatpush.bf16.msra.mxu0 %v310
    %530 = vmatmul.bf16.gmra.mxu0 %v28
    %v531 = vpop.f32.mrf.mxu0
    %v532 = vadd.f32 %v102, %v531
    %v533 = vpop.f32.mrf.mxu0
    %534 = vdwg.mxu0
    %v535 = vld [vmem:[%s3] sm:$0xff]
    %v537 = vperm.slane %v535, 0
    %v538 = vperm.slane %v535, 1
    %v539 = vperm.slane %v535, 2
    %v540 = vperm.slane %v535, 3
    %v541 = vperm.slane %v535, 4
    %v542 = vperm.slane %v535, 5
    %v543 = vperm.slane %v535, 6
    %v544 = vperm.slane %v535, 7
    %v553 = vmul.f32 %v441, %v537
    %v554 = vmul.f32 %v454, %v538
    %v555 = vmul.f32 %v467, %v539
    %v556 = vmul.f32 %v480, %v540
    %v557 = vmul.f32 %v493, %v541
    %v558 = vmul.f32 %v506, %v542
    %v559 = vmul.f32 %v519, %v543
    %v560 = vmul.f32 %v532, %v544
    %v561 = vld [vmem:[%s4] sm:$0xff]
    %v563 = vperm.slane %v561, 0
    %v564 = vperm.slane %v561, 1
    %v565 = vperm.slane %v561, 2
    %v566 = vperm.slane %v561, 3
    %v567 = vperm.slane %v561, 4
    %v568 = vperm.slane %v561, 5
    %v569 = vperm.slane %v561, 6
    %v570 = vperm.slane %v561, 7
    %v579 = vadd.f32 %v553, %v563
    %v580 = vadd.f32 %v554, %v564
    %v581 = vadd.f32 %v555, %v565
    %v582 = vadd.f32 %v556, %v566
    %v583 = vadd.f32 %v557, %v567
    %v584 = vadd.f32 %v558, %v568
    %v585 = vadd.f32 %v559, %v569
    %v586 = vadd.f32 %v560, %v570
    %v587 = vmul.f32 %v579, 0.5
    %v588 = vmul.f32 %v580, 0.5
    %v589 = vmul.f32 %v581, 0.5
    %v590 = vmul.f32 %v582, 0.5
    %v591 = vmul.f32 %v583, 0.5
    %v592 = vmul.f32 %v584, 0.5
    %v593 = vmul.f32 %v585, 0.5
    %v594 = vmul.f32 %v586, 0.5
    %v595 = vmul.f32 %v579, 0.70710677
    %v596 = vmul.f32 %v580, 0.70710677
    %v597 = vmul.f32 %v581, 0.70710677
    %v598 = vmul.f32 %v582, 0.70710677
    %v599 = vmul.f32 %v583, 0.70710677
    %v600 = vmul.f32 %v584, 0.70710677
    %v601 = vmul.f32 %v585, 0.70710677
    %v602 = vmul.f32 %v586, 0.70710677
    %v603 = vmul.f32 %v595, %v595
    %v604 = vmin.f32 16.0, %v603
    %v605 = vmul.f32 %v604, 2.1237322e-06
    %v606 = vadd.f32 %v605, 0.00028619796
    %v607 = vmul.f32 %v604, %v606
    %v608 = vadd.f32 %v607, 0.0036580483
    %v609 = vmul.f32 %v604, %v608
    %v610 = vadd.f32 %v609, 0.05243302
    %v611 = vmul.f32 %v604, %v610
    %v612 = vadd.f32 %v611, 0.18741608
    %v613 = vmul.f32 %v604, %v612
    %v614 = vadd.f32 %v613, 1.1283791
    %v615 = vmul.f32 %v595, %v614
    %v616 = vmul.f32 %v604, 3.8918573e-05
    %v617 = vadd.f32 %v616, 0.001143296
    %v618 = vmul.f32 %v604, %v617
    %v619 = vadd.f32 %v618, 0.014752088
    %v620 = vmul.f32 %v604, %v619
    %v621 = vadd.f32 %v620, 0.112945676
    %v622 = vmul.f32 %v604, %v621
    %v623 = vadd.f32 %v622, 0.4994258
    %v624 = vmul.f32 %v604, %v623
    %v625 = vadd.f32 %v624, 1.0
    %v626 = vrcp.pop %v625
    %v627 = vmul.f32 %v625, %v626
    %v628 = vsub.f32 1.0, %v627
    %v629 = vmul.f32 %v626, %v628
    %v630 = vadd.f32 %v626, %v629
    %vm631 = vweird.f32 %v625
    %vm632 = vweird.f32 %v626
    %vm633 = vmor %vm631, %vm632
    %v634 = vsel %vm633, %v626, %v630
    %v635 = vand.u32 2147483647, %v625
    %vm636 = vcmp.eq.f32.partialorder %v635, 8.507059e+37
    %v637 = vand.u32 %v625, 2147483648
    %v638 = vor.u32 1.1754944e-38, %v637
    %v639 = vsel %vm636, %v638, %v634
    %v640 = vmul.f32 %v615, %v639
    %v641 = vmin.f32 %v640, 1.0
    %v642 = vmax.f32 %v641, -1.0
    %v643 = vmul.f32 %v596, %v596
    %v644 = vmin.f32 16.0, %v643
    %v645 = vmul.f32 %v644, 2.1237322e-06
    %v646 = vadd.f32 %v645, 0.00028619796
    %v647 = vmul.f32 %v644, %v646
    %v648 = vadd.f32 %v647, 0.0036580483
    %v649 = vmul.f32 %v644, %v648
    %v650 = vadd.f32 %v649, 0.05243302
    %v651 = vmul.f32 %v644, %v650
    %v652 = vadd.f32 %v651, 0.18741608
    %v653 = vmul.f32 %v644, %v652
    %v654 = vadd.f32 %v653, 1.1283791
    %v655 = vmul.f32 %v596, %v654
    %v656 = vmul.f32 %v644, 3.8918573e-05
    %v657 = vadd.f32 %v656, 0.001143296
    %v658 = vmul.f32 %v644, %v657
    %v659 = vadd.f32 %v658, 0.014752088
    %v660 = vmul.f32 %v644, %v659
    %v661 = vadd.f32 %v660, 0.112945676
    %v662 = vmul.f32 %v644, %v661
    %v663 = vadd.f32 %v662, 0.4994258
    %v664 = vmul.f32 %v644, %v663
    %v665 = vadd.f32 %v664, 1.0
    %v666 = vrcp.pop %v665
    %v667 = vmul.f32 %v665, %v666
    %v668 = vsub.f32 1.0, %v667
    %v669 = vmul.f32 %v666, %v668
    %v670 = vadd.f32 %v666, %v669
    %vm671 = vweird.f32 %v665
    %vm672 = vweird.f32 %v666
    %vm673 = vmor %vm671, %vm672
    %v674 = vsel %vm673, %v666, %v670
    %v675 = vand.u32 2147483647, %v665
    %vm676 = vcmp.eq.f32.partialorder %v675, 8.507059e+37
    %v677 = vand.u32 %v665, 2147483648
    %v678 = vor.u32 1.1754944e-38, %v677
    %v679 = vsel %vm676, %v678, %v674
    %v680 = vmul.f32 %v655, %v679
    %v681 = vmin.f32 %v680, 1.0
    %v682 = vmax.f32 %v681, -1.0
    %v683 = vmul.f32 %v597, %v597
    %v684 = vmin.f32 16.0, %v683
    %v685 = vmul.f32 %v684, 2.1237322e-06
    %v686 = vadd.f32 %v685, 0.00028619796
    %v687 = vmul.f32 %v684, %v686
    %v688 = vadd.f32 %v687, 0.0036580483
    %v689 = vmul.f32 %v684, %v688
    %v690 = vadd.f32 %v689, 0.05243302
    %v691 = vmul.f32 %v684, %v690
    %v692 = vadd.f32 %v691, 0.18741608
    %v693 = vmul.f32 %v684, %v692
    %v694 = vadd.f32 %v693, 1.1283791
    %v695 = vmul.f32 %v597, %v694
    %v696 = vmul.f32 %v684, 3.8918573e-05
    %v697 = vadd.f32 %v696, 0.001143296
    %v698 = vmul.f32 %v684, %v697
    %v699 = vadd.f32 %v698, 0.014752088
    %v700 = vmul.f32 %v684, %v699
    %v701 = vadd.f32 %v700, 0.112945676
    %v702 = vmul.f32 %v684, %v701
    %v703 = vadd.f32 %v702, 0.4994258
    %v704 = vmul.f32 %v684, %v703
    %v705 = vadd.f32 %v704, 1.0
    %v706 = vrcp.pop %v705
    %v707 = vmul.f32 %v705, %v706
    %v708 = vsub.f32 1.0, %v707
    %v709 = vmul.f32 %v706, %v708
    %v710 = vadd.f32 %v706, %v709
    %vm711 = vweird.f32 %v705
    %vm712 = vweird.f32 %v706
    %vm713 = vmor %vm711, %vm712
    %v714 = vsel %vm713, %v706, %v710
    %v715 = vand.u32 2147483647, %v705
    %vm716 = vcmp.eq.f32.partialorder %v715, 8.507059e+37
    %v717 = vand.u32 %v705, 2147483648
    %v718 = vor.u32 1.1754944e-38, %v717
    %v719 = vsel %vm716, %v718, %v714
    %v720 = vmul.f32 %v695, %v719
    %v721 = vmin.f32 %v720, 1.0
    %v722 = vmax.f32 %v721, -1.0
    %v723 = vmul.f32 %v598, %v598
    %v724 = vmin.f32 16.0, %v723
    %v725 = vmul.f32 %v724, 2.1237322e-06
    %v726 = vadd.f32 %v725, 0.00028619796
    %v727 = vmul.f32 %v724, %v726
    %v728 = vadd.f32 %v727, 0.0036580483
    %v729 = vmul.f32 %v724, %v728
    %v730 = vadd.f32 %v729, 0.05243302
    %v731 = vmul.f32 %v724, %v730
    %v732 = vadd.f32 %v731, 0.18741608
    %v733 = vmul.f32 %v724, %v732
    %v734 = vadd.f32 %v733, 1.1283791
    %v735 = vmul.f32 %v598, %v734
    %v736 = vmul.f32 %v724, 3.8918573e-05
    %v737 = vadd.f32 %v736, 0.001143296
    %v738 = vmul.f32 %v724, %v737
    %v739 = vadd.f32 %v738, 0.014752088
    %v740 = vmul.f32 %v724, %v739
    %v741 = vadd.f32 %v740, 0.112945676
    %v742 = vmul.f32 %v724, %v741
    %v743 = vadd.f32 %v742, 0.4994258
    %v744 = vmul.f32 %v724, %v743
    %v745 = vadd.f32 %v744, 1.0
    %v746 = vrcp.pop %v745
    %v747 = vmul.f32 %v745, %v746
    %v748 = vsub.f32 1.0, %v747
    %v749 = vmul.f32 %v746, %v748
    %v750 = vadd.f32 %v746, %v749
    %vm751 = vweird.f32 %v745
    %vm752 = vweird.f32 %v746
    %vm753 = vmor %vm751, %vm752
    %v754 = vsel %vm753, %v746, %v750
    %v755 = vand.u32 2147483647, %v745
    %vm756 = vcmp.eq.f32.partialorder %v755, 8.507059e+37
    %v757 = vand.u32 %v745, 2147483648
    %v758 = vor.u32 1.1754944e-38, %v757
    %v759 = vsel %vm756, %v758, %v754
    %v760 = vmul.f32 %v735, %v759
    %v761 = vmin.f32 %v760, 1.0
    %v762 = vmax.f32 %v761, -1.0
    %v763 = vmul.f32 %v599, %v599
    %v764 = vmin.f32 16.0, %v763
    %v765 = vmul.f32 %v764, 2.1237322e-06
    %v766 = vadd.f32 %v765, 0.00028619796
    %v767 = vmul.f32 %v764, %v766
    %v768 = vadd.f32 %v767, 0.0036580483
    %v769 = vmul.f32 %v764, %v768
    %v770 = vadd.f32 %v769, 0.05243302
    %v771 = vmul.f32 %v764, %v770
    %v772 = vadd.f32 %v771, 0.18741608
    %v773 = vmul.f32 %v764, %v772
    %v774 = vadd.f32 %v773, 1.1283791
    %v775 = vmul.f32 %v599, %v774
    %v776 = vmul.f32 %v764, 3.8918573e-05
    %v777 = vadd.f32 %v776, 0.001143296
    %v778 = vmul.f32 %v764, %v777
    %v779 = vadd.f32 %v778, 0.014752088
    %v780 = vmul.f32 %v764, %v779
    %v781 = vadd.f32 %v780, 0.112945676
    %v782 = vmul.f32 %v764, %v781
    %v783 = vadd.f32 %v782, 0.4994258
    %v784 = vmul.f32 %v764, %v783
    %v785 = vadd.f32 %v784, 1.0
    %v786 = vrcp.pop %v785
    %v787 = vmul.f32 %v785, %v786
    %v788 = vsub.f32 1.0, %v787
    %v789 = vmul.f32 %v786, %v788
    %v790 = vadd.f32 %v786, %v789
    %vm791 = vweird.f32 %v785
    %vm792 = vweird.f32 %v786
    %vm793 = vmor %vm791, %vm792
    %v794 = vsel %vm793, %v786, %v790
    %v795 = vand.u32 2147483647, %v785
    %vm796 = vcmp.eq.f32.partialorder %v795, 8.507059e+37
    %v797 = vand.u32 %v785, 2147483648
    %v798 = vor.u32 1.1754944e-38, %v797
    %v799 = vsel %vm796, %v798, %v794
    %v800 = vmul.f32 %v775, %v799
    %v801 = vmin.f32 %v800, 1.0
    %v802 = vmax.f32 %v801, -1.0
    %v803 = vmul.f32 %v600, %v600
    %v804 = vmin.f32 16.0, %v803
    %v805 = vmul.f32 %v804, 2.1237322e-06
    %v806 = vadd.f32 %v805, 0.00028619796
    %v807 = vmul.f32 %v804, %v806
    %v808 = vadd.f32 %v807, 0.0036580483
    %v809 = vmul.f32 %v804, %v808
    %v810 = vadd.f32 %v809, 0.05243302
    %v811 = vmul.f32 %v804, %v810
    %v812 = vadd.f32 %v811, 0.18741608
    %v813 = vmul.f32 %v804, %v812
    %v814 = vadd.f32 %v813, 1.1283791
    %v815 = vmul.f32 %v600, %v814
    %v816 = vmul.f32 %v804, 3.8918573e-05
    %v817 = vadd.f32 %v816, 0.001143296
    %v818 = vmul.f32 %v804, %v817
    %v819 = vadd.f32 %v818, 0.014752088
    %v820 = vmul.f32 %v804, %v819
    %v821 = vadd.f32 %v820, 0.112945676
    %v822 = vmul.f32 %v804, %v821
    %v823 = vadd.f32 %v822, 0.4994258
    %v824 = vmul.f32 %v804, %v823
    %v825 = vadd.f32 %v824, 1.0
    %v826 = vrcp.pop %v825
    %v827 = vmul.f32 %v825, %v826
    %v828 = vsub.f32 1.0, %v827
    %v829 = vmul.f32 %v826, %v828
    %v830 = vadd.f32 %v826, %v829
    %vm831 = vweird.f32 %v825
    %vm832 = vweird.f32 %v826
    %vm833 = vmor %vm831, %vm832
    %v834 = vsel %vm833, %v826, %v830
    %v835 = vand.u32 2147483647, %v825
    %vm836 = vcmp.eq.f32.partialorder %v835, 8.507059e+37
    %v837 = vand.u32 %v825, 2147483648
    %v838 = vor.u32 1.1754944e-38, %v837
    %v839 = vsel %vm836, %v838, %v834
    %v840 = vmul.f32 %v815, %v839
    %v841 = vmin.f32 %v840, 1.0
    %v842 = vmax.f32 %v841, -1.0
    %v843 = vmul.f32 %v601, %v601
    %v844 = vmin.f32 16.0, %v843
    %v845 = vmul.f32 %v844, 2.1237322e-06
    %v846 = vadd.f32 %v845, 0.00028619796
    %v847 = vmul.f32 %v844, %v846
    %v848 = vadd.f32 %v847, 0.0036580483
    %v849 = vmul.f32 %v844, %v848
    %v850 = vadd.f32 %v849, 0.05243302
    %v851 = vmul.f32 %v844, %v850
    %v852 = vadd.f32 %v851, 0.18741608
    %v853 = vmul.f32 %v844, %v852
    %v854 = vadd.f32 %v853, 1.1283791
    %v855 = vmul.f32 %v601, %v854
    %v856 = vmul.f32 %v844, 3.8918573e-05
    %v857 = vadd.f32 %v856, 0.001143296
    %v858 = vmul.f32 %v844, %v857
    %v859 = vadd.f32 %v858, 0.014752088
    %v860 = vmul.f32 %v844, %v859
    %v861 = vadd.f32 %v860, 0.112945676
    %v862 = vmul.f32 %v844, %v861
    %v863 = vadd.f32 %v862, 0.4994258
    %v864 = vmul.f32 %v844, %v863
    %v865 = vadd.f32 %v864, 1.0
    %v866 = vrcp.pop %v865
    %v867 = vmul.f32 %v865, %v866
    %v868 = vsub.f32 1.0, %v867
    %v869 = vmul.f32 %v866, %v868
    %v870 = vadd.f32 %v866, %v869
    %vm871 = vweird.f32 %v865
    %vm872 = vweird.f32 %v866
    %vm873 = vmor %vm871, %vm872
    %v874 = vsel %vm873, %v866, %v870
    %v875 = vand.u32 2147483647, %v865
    %vm876 = vcmp.eq.f32.partialorder %v875, 8.507059e+37
    %v877 = vand.u32 %v865, 2147483648
    %v878 = vor.u32 1.1754944e-38, %v877
    %v879 = vsel %vm876, %v878, %v874
    %v880 = vmul.f32 %v855, %v879
    %v881 = vmin.f32 %v880, 1.0
    %v882 = vmax.f32 %v881, -1.0
    %v883 = vmul.f32 %v602, %v602
    %v884 = vmin.f32 16.0, %v883
    %v885 = vmul.f32 %v884, 2.1237322e-06
    %v886 = vadd.f32 %v885, 0.00028619796
    %v887 = vmul.f32 %v884, %v886
    %v888 = vadd.f32 %v887, 0.0036580483
    %v889 = vmul.f32 %v884, %v888
    %v890 = vadd.f32 %v889, 0.05243302
    %v891 = vmul.f32 %v884, %v890
    %v892 = vadd.f32 %v891, 0.18741608
    %v893 = vmul.f32 %v884, %v892
    %v894 = vadd.f32 %v893, 1.1283791
    %v895 = vmul.f32 %v602, %v894
    %v896 = vmul.f32 %v884, 3.8918573e-05
    %v897 = vadd.f32 %v896, 0.001143296
    %v898 = vmul.f32 %v884, %v897
    %v899 = vadd.f32 %v898, 0.014752088
    %v900 = vmul.f32 %v884, %v899
    %v901 = vadd.f32 %v900, 0.112945676
    %v902 = vmul.f32 %v884, %v901
    %v903 = vadd.f32 %v902, 0.4994258
    %v904 = vmul.f32 %v884, %v903
    %v905 = vadd.f32 %v904, 1.0
    %v906 = vrcp.pop %v905
    %v907 = vmul.f32 %v905, %v906
    %v908 = vsub.f32 1.0, %v907
    %v909 = vmul.f32 %v906, %v908
    %v910 = vadd.f32 %v906, %v909
    %vm911 = vweird.f32 %v905
    %vm912 = vweird.f32 %v906
    %vm913 = vmor %vm911, %vm912
    %v914 = vsel %vm913, %v906, %v910
    %v915 = vand.u32 2147483647, %v905
    %vm916 = vcmp.eq.f32.partialorder %v915, 8.507059e+37
    %v917 = vand.u32 %v905, 2147483648
    %v918 = vor.u32 1.1754944e-38, %v917
    %v919 = vsel %vm916, %v918, %v914
    %v920 = vmul.f32 %v895, %v919
    %v921 = vmin.f32 %v920, 1.0
    %v922 = vmax.f32 %v921, -1.0
    %v923 = vadd.f32 %v642, 1.0
    %v924 = vadd.f32 %v682, 1.0
    %v925 = vadd.f32 %v722, 1.0
    %v926 = vadd.f32 %v762, 1.0
    %v927 = vadd.f32 %v802, 1.0
    %v928 = vadd.f32 %v842, 1.0
    %v929 = vadd.f32 %v882, 1.0
    %v930 = vadd.f32 %v922, 1.0
    %v931 = vmul.f32 %v587, %v923
    %v932 = vmul.f32 %v588, %v924
    %v933 = vmul.f32 %v589, %v925
    %v934 = vmul.f32 %v590, %v926
    %v935 = vmul.f32 %v591, %v927
    %v936 = vmul.f32 %v592, %v928
    %v937 = vmul.f32 %v593, %v929
    %v938 = vmul.f32 %v594, %v930
    %v939 = vld [vmem:[%s5] sm:$0xff]
    %v940 = vld [vmem:[%s5 + $0x8] sm:$0xff]
    %v941 = vld [vmem:[%s5 + $0x10] sm:$0xff]
    %v942 = vld [vmem:[%s5 + $0x18] sm:$0xff]
    %v943 = vld [vmem:[%s5 + $0x20] sm:$0xff]
    %v944 = vld [vmem:[%s5 + $0x28] sm:$0xff]
    %v945 = vld [vmem:[%s5 + $0x30] sm:$0xff]
    %v946 = vld [vmem:[%s5 + $0x38] sm:$0xff]
    %v947 = vld [vmem:[%s5 + $0x40] sm:$0xff]
    %v948 = vld [vmem:[%s5 + $0x48] sm:$0xff]
    %v949 = vld [vmem:[%s5 + $0x50] sm:$0xff]
    %v950 = vld [vmem:[%s5 + $0x58] sm:$0xff]
    %v951 = vld [vmem:[%s5 + $0x60] sm:$0xff]
    %v952 = vld [vmem:[%s5 + $0x68] sm:$0xff]
    %v953 = vld [vmem:[%s5 + $0x70] sm:$0xff]
    %v954 = vld [vmem:[%s5 + $0x78] sm:$0xff]
    %v955 = vld [vmem:[%s5 + $0x80] sm:$0xff]
    %v956 = vld [vmem:[%s5 + $0x88] sm:$0xff]
    %v957 = vld [vmem:[%s5 + $0x90] sm:$0xff]
    %v958 = vld [vmem:[%s5 + $0x98] sm:$0xff]
    %v959 = vld [vmem:[%s5 + $0xa0] sm:$0xff]
    %v960 = vld [vmem:[%s5 + $0xa8] sm:$0xff]
    %v961 = vld [vmem:[%s5 + $0xb0] sm:$0xff]
    %v962 = vld [vmem:[%s5 + $0xb8] sm:$0xff]
    %v963 = vld [vmem:[%s5 + $0xc0] sm:$0xff]
    %v964 = vld [vmem:[%s5 + $0xc8] sm:$0xff]
    %v965 = vld [vmem:[%s5 + $0xd0] sm:$0xff]
    %v966 = vld [vmem:[%s5 + $0xd8] sm:$0xff]
    %v967 = vld [vmem:[%s5 + $0xe0] sm:$0xff]
    %v968 = vld [vmem:[%s5 + $0xe8] sm:$0xff]
    %v969 = vld [vmem:[%s5 + $0xf0] sm:$0xff]
    %v970 = vld [vmem:[%s5 + $0xf8] sm:$0xff]
    %v971 = vld [vmem:[%s5 + $0x100] sm:$0xff]
    %v972 = vld [vmem:[%s5 + $0x108] sm:$0xff]
    %v973 = vld [vmem:[%s5 + $0x110] sm:$0xff]
    %v974 = vld [vmem:[%s5 + $0x118] sm:$0xff]
    %v975 = vld [vmem:[%s5 + $0x120] sm:$0xff]
    %v976 = vld [vmem:[%s5 + $0x128] sm:$0xff]
    %v977 = vld [vmem:[%s5 + $0x130] sm:$0xff]
    %v978 = vld [vmem:[%s5 + $0x138] sm:$0xff]
    %v979 = vld [vmem:[%s5 + $0x140] sm:$0xff]
    %v980 = vld [vmem:[%s5 + $0x148] sm:$0xff]
    %v981 = vld [vmem:[%s5 + $0x150] sm:$0xff]
    %v982 = vld [vmem:[%s5 + $0x158] sm:$0xff]
    %v983 = vld [vmem:[%s5 + $0x160] sm:$0xff]
    %v984 = vld [vmem:[%s5 + $0x168] sm:$0xff]
    %v985 = vld [vmem:[%s5 + $0x170] sm:$0xff]
    %v986 = vld [vmem:[%s5 + $0x178] sm:$0xff]
    %v987 = vld [vmem:[%s5 + $0x180] sm:$0xff]
    %v988 = vld [vmem:[%s5 + $0x188] sm:$0xff]
    %v989 = vld [vmem:[%s5 + $0x190] sm:$0xff]
    %v990 = vld [vmem:[%s5 + $0x198] sm:$0xff]
    %v991 = vld [vmem:[%s5 + $0x1a0] sm:$0xff]
    %v992 = vld [vmem:[%s5 + $0x1a8] sm:$0xff]
    %v993 = vld [vmem:[%s5 + $0x1b0] sm:$0xff]
    %v994 = vld [vmem:[%s5 + $0x1b8] sm:$0xff]
    %v995 = vld [vmem:[%s5 + $0x1c0] sm:$0xff]
    %v996 = vld [vmem:[%s5 + $0x1c8] sm:$0xff]
    %v997 = vld [vmem:[%s5 + $0x1d0] sm:$0xff]
    %v998 = vld [vmem:[%s5 + $0x1d8] sm:$0xff]
    %v999 = vld [vmem:[%s5 + $0x1e0] sm:$0xff]
    %v1000 = vld [vmem:[%s5 + $0x1e8] sm:$0xff]
    %v1001 = vld [vmem:[%s5 + $0x1f0] sm:$0xff]
    %v1002 = vld [vmem:[%s5 + $0x1f8] sm:$0xff]
    %v1003 = vld [vmem:[%s5 + $0x200] sm:$0xff]
    %v1004 = vld [vmem:[%s5 + $0x208] sm:$0xff]
    %v1005 = vld [vmem:[%s5 + $0x210] sm:$0xff]
    %v1006 = vld [vmem:[%s5 + $0x218] sm:$0xff]
    %v1007 = vld [vmem:[%s5 + $0x220] sm:$0xff]
    %v1008 = vld [vmem:[%s5 + $0x228] sm:$0xff]
    %v1009 = vld [vmem:[%s5 + $0x230] sm:$0xff]
    %v1010 = vld [vmem:[%s5 + $0x238] sm:$0xff]
    %v1011 = vld [vmem:[%s5 + $0x240] sm:$0xff]
    %v1012 = vld [vmem:[%s5 + $0x248] sm:$0xff]
    %v1013 = vld [vmem:[%s5 + $0x250] sm:$0xff]
    %v1014 = vld [vmem:[%s5 + $0x258] sm:$0xff]
    %v1015 = vld [vmem:[%s5 + $0x260] sm:$0xff]
    %v1016 = vld [vmem:[%s5 + $0x268] sm:$0xff]
    %v1017 = vld [vmem:[%s5 + $0x270] sm:$0xff]
    %v1018 = vld [vmem:[%s5 + $0x278] sm:$0xff]
    %v1019 = vld [vmem:[%s5 + $0x280] sm:$0xff]
    %v1020 = vld [vmem:[%s5 + $0x288] sm:$0xff]
    %v1021 = vld [vmem:[%s5 + $0x290] sm:$0xff]
    %v1022 = vld [vmem:[%s5 + $0x298] sm:$0xff]
    %v1023 = vld [vmem:[%s5 + $0x2a0] sm:$0xff]
    %v1024 = vld [vmem:[%s5 + $0x2a8] sm:$0xff]
    %v1025 = vld [vmem:[%s5 + $0x2b0] sm:$0xff]
    %v1026 = vld [vmem:[%s5 + $0x2b8] sm:$0xff]
    %v1027 = vld [vmem:[%s5 + $0x2c0] sm:$0xff]
    %v1028 = vld [vmem:[%s5 + $0x2c8] sm:$0xff]
    %v1029 = vld [vmem:[%s5 + $0x2d0] sm:$0xff]
    %v1030 = vld [vmem:[%s5 + $0x2d8] sm:$0xff]
    %v1031 = vld [vmem:[%s5 + $0x2e0] sm:$0xff]
    %v1032 = vld [vmem:[%s5 + $0x2e8] sm:$0xff]
    %v1033 = vld [vmem:[%s5 + $0x2f0] sm:$0xff]
    %v1034 = vld [vmem:[%s5 + $0x2f8] sm:$0xff]
    %v1035 = vld [vmem:[%s5 + $0x300] sm:$0xff]
    %v1036 = vld [vmem:[%s5 + $0x308] sm:$0xff]
    %v1037 = vld [vmem:[%s5 + $0x310] sm:$0xff]
    %v1038 = vld [vmem:[%s5 + $0x318] sm:$0xff]
    %v1039 = vld [vmem:[%s5 + $0x320] sm:$0xff]
    %v1040 = vld [vmem:[%s5 + $0x328] sm:$0xff]
    %v1041 = vld [vmem:[%s5 + $0x330] sm:$0xff]
    %v1042 = vld [vmem:[%s5 + $0x338] sm:$0xff]
    %v1043 = vld [vmem:[%s5 + $0x340] sm:$0xff]
    %v1044 = vld [vmem:[%s5 + $0x348] sm:$0xff]
    %v1045 = vld [vmem:[%s5 + $0x350] sm:$0xff]
    %v1046 = vld [vmem:[%s5 + $0x358] sm:$0xff]
    %v1047 = vld [vmem:[%s5 + $0x360] sm:$0xff]
    %v1048 = vld [vmem:[%s5 + $0x368] sm:$0xff]
    %v1049 = vld [vmem:[%s5 + $0x370] sm:$0xff]
    %v1050 = vld [vmem:[%s5 + $0x378] sm:$0xff]
    %v1051 = vld [vmem:[%s5 + $0x380] sm:$0xff]
    %v1052 = vld [vmem:[%s5 + $0x388] sm:$0xff]
    %v1053 = vld [vmem:[%s5 + $0x390] sm:$0xff]
    %v1054 = vld [vmem:[%s5 + $0x398] sm:$0xff]
    %v1055 = vld [vmem:[%s5 + $0x3a0] sm:$0xff]
    %v1056 = vld [vmem:[%s5 + $0x3a8] sm:$0xff]
    %v1057 = vld [vmem:[%s5 + $0x3b0] sm:$0xff]
    %v1058 = vld [vmem:[%s5 + $0x3b8] sm:$0xff]
    %v1059 = vld [vmem:[%s5 + $0x3c0] sm:$0xff]
    %v1060 = vld [vmem:[%s5 + $0x3c8] sm:$0xff]
    %v1061 = vld [vmem:[%s5 + $0x3d0] sm:$0xff]
    %v1062 = vld [vmem:[%s5 + $0x3d8] sm:$0xff]
    %v1063 = vld [vmem:[%s5 + $0x3e0] sm:$0xff]
    %v1064 = vld [vmem:[%s5 + $0x3e8] sm:$0xff]
    %v1065 = vld [vmem:[%s5 + $0x3f0] sm:$0xff]
    %v1066 = vld [vmem:[%s5 + $0x3f8] sm:$0xff]
    %v1067 = vld [vmem:[%s6] sm:$0x1]
    %v1069 = vperm.slane %v1067, 0
    %1071 = vmatpush.msra.mxu0 %v954
    %1072 = vmatpush.msra.mxu0 %v953
    %1073 = vmatpush.msra.mxu0 %v952
    %1074 = vmatpush.msra.mxu0 %v951
    %1075 = vmatpush.msra.mxu0 %v950
    %1076 = vmatpush.msra.mxu0 %v949
    %1077 = vmatpush.msra.mxu0 %v948
    %1078 = vmatpush.msra.mxu0 %v947
    %1079 = vmatpush.msra.mxu0 %v946
    %1080 = vmatpush.msra.mxu0 %v945
    %1081 = vmatpush.msra.mxu0 %v944
    %1082 = vmatpush.msra.mxu0 %v943
    %1083 = vmatpush.msra.mxu0 %v942
    %1084 = vmatpush.msra.mxu0 %v941
    %1085 = vmatpush.msra.mxu0 %v940
    %1086 = vmatpush.msra.mxu0 %v939
    %1087 = vmatmul.f32.gmra.mxu0 %v931
    %v1088 = vpop.f32.mrf.mxu0
    %v1089 = vadd.f32 %v1069, %v1088
    %1090 = vdwg.mxu0
    %1091 = vmatpush.msra.mxu0 %v970
    %1092 = vmatpush.msra.mxu0 %v969
    %1093 = vmatpush.msra.mxu0 %v968
    %1094 = vmatpush.msra.mxu0 %v967
    %1095 = vmatpush.msra.mxu0 %v966
    %1096 = vmatpush.msra.mxu0 %v965
    %1097 = vmatpush.msra.mxu0 %v964
    %1098 = vmatpush.msra.mxu0 %v963
    %1099 = vmatpush.msra.mxu0 %v962
    %1100 = vmatpush.msra.mxu0 %v961
    %1101 = vmatpush.msra.mxu0 %v960
    %1102 = vmatpush.msra.mxu0 %v959
    %1103 = vmatpush.msra.mxu0 %v958
    %1104 = vmatpush.msra.mxu0 %v957
    %1105 = vmatpush.msra.mxu0 %v956
    %1106 = vmatpush.msra.mxu0 %v955
    %1107 = vmatmul.f32.gmra.mxu0 %v932
    %v1108 = vpop.f32.mrf.mxu0
    %v1109 = vadd.f32 %v1089, %v1108
    %1110 = vdwg.mxu0
    %1111 = vmatpush.msra.mxu0 %v986
    %1112 = vmatpush.msra.mxu0 %v985
    %1113 = vmatpush.msra.mxu0 %v984
    %1114 = vmatpush.msra.mxu0 %v983
    %1115 = vmatpush.msra.mxu0 %v982
    %1116 = vmatpush.msra.mxu0 %v981
    %1117 = vmatpush.msra.mxu0 %v980
    %1118 = vmatpush.msra.mxu0 %v979
    %1119 = vmatpush.msra.mxu0 %v978
    %1120 = vmatpush.msra.mxu0 %v977
    %1121 = vmatpush.msra.mxu0 %v976
    %1122 = vmatpush.msra.mxu0 %v975
    %1123 = vmatpush.msra.mxu0 %v974
    %1124 = vmatpush.msra.mxu0 %v973
    %1125 = vmatpush.msra.mxu0 %v972
    %1126 = vmatpush.msra.mxu0 %v971
    %1127 = vmatmul.f32.gmra.mxu0 %v933
    %v1128 = vpop.f32.mrf.mxu0
    %v1129 = vadd.f32 %v1109, %v1128
    %1130 = vdwg.mxu0
    %1131 = vmatpush.msra.mxu0 %v1002
    %1132 = vmatpush.msra.mxu0 %v1001
    %1133 = vmatpush.msra.mxu0 %v1000
    %1134 = vmatpush.msra.mxu0 %v999
    %1135 = vmatpush.msra.mxu0 %v998
    %1136 = vmatpush.msra.mxu0 %v997
    %1137 = vmatpush.msra.mxu0 %v996
    %1138 = vmatpush.msra.mxu0 %v995
    %1139 = vmatpush.msra.mxu0 %v994
    %1140 = vmatpush.msra.mxu0 %v993
    %1141 = vmatpush.msra.mxu0 %v992
    %1142 = vmatpush.msra.mxu0 %v991
    %1143 = vmatpush.msra.mxu0 %v990
    %1144 = vmatpush.msra.mxu0 %v989
    %1145 = vmatpush.msra.mxu0 %v988
    %1146 = vmatpush.msra.mxu0 %v987
    %1147 = vmatmul.f32.gmra.mxu0 %v934
    %v1148 = vpop.f32.mrf.mxu0
    %v1149 = vadd.f32 %v1129, %v1148
    %1150 = vdwg.mxu0
    %1151 = vmatpush.msra.mxu0 %v1018
    %1152 = vmatpush.msra.mxu0 %v1017
    %1153 = vmatpush.msra.mxu0 %v1016
    %1154 = vmatpush.msra.mxu0 %v1015
    %1155 = vmatpush.msra.mxu0 %v1014
    %1156 = vmatpush.msra.mxu0 %v1013
    %1157 = vmatpush.msra.mxu0 %v1012
    %1158 = vmatpush.msra.mxu0 %v1011
    %1159 = vmatpush.msra.mxu0 %v1010
    %1160 = vmatpush.msra.mxu0 %v1009
    %1161 = vmatpush.msra.mxu0 %v1008
    %1162 = vmatpush.msra.mxu0 %v1007
    %1163 = vmatpush.msra.mxu0 %v1006
    %1164 = vmatpush.msra.mxu0 %v1005
    %1165 = vmatpush.msra.mxu0 %v1004
    %1166 = vmatpush.msra.mxu0 %v1003
    %1167 = vmatmul.f32.gmra.mxu0 %v935
    %v1168 = vpop.f32.mrf.mxu0
    %v1169 = vadd.f32 %v1149, %v1168
    %1170 = vdwg.mxu0
    %1171 = vmatpush.msra.mxu0 %v1034
    %1172 = vmatpush.msra.mxu0 %v1033
    %1173 = vmatpush.msra.mxu0 %v1032
    %1174 = vmatpush.msra.mxu0 %v1031
    %1175 = vmatpush.msra.mxu0 %v1030
    %1176 = vmatpush.msra.mxu0 %v1029
    %1177 = vmatpush.msra.mxu0 %v1028
    %1178 = vmatpush.msra.mxu0 %v1027
    %1179 = vmatpush.msra.mxu0 %v1026
    %1180 = vmatpush.msra.mxu0 %v1025
    %1181 = vmatpush.msra.mxu0 %v1024
    %1182 = vmatpush.msra.mxu0 %v1023
    %1183 = vmatpush.msra.mxu0 %v1022
    %1184 = vmatpush.msra.mxu0 %v1021
    %1185 = vmatpush.msra.mxu0 %v1020
    %1186 = vmatpush.msra.mxu0 %v1019
    %1187 = vmatmul.f32.gmra.mxu0 %v936
    %v1188 = vpop.f32.mrf.mxu0
    %v1189 = vadd.f32 %v1169, %v1188
    %1190 = vdwg.mxu0
    %1191 = vmatpush.msra.mxu0 %v1050
    %1192 = vmatpush.msra.mxu0 %v1049
    %1193 = vmatpush.msra.mxu0 %v1048
    %1194 = vmatpush.msra.mxu0 %v1047
    %1195 = vmatpush.msra.mxu0 %v1046
    %1196 = vmatpush.msra.mxu0 %v1045
    %1197 = vmatpush.msra.mxu0 %v1044
    %1198 = vmatpush.msra.mxu0 %v1043
    %1199 = vmatpush.msra.mxu0 %v1042
    %1200 = vmatpush.msra.mxu0 %v1041
    %1201 = vmatpush.msra.mxu0 %v1040
    %1202 = vmatpush.msra.mxu0 %v1039
    %1203 = vmatpush.msra.mxu0 %v1038
    %1204 = vmatpush.msra.mxu0 %v1037
    %1205 = vmatpush.msra.mxu0 %v1036
    %1206 = vmatpush.msra.mxu0 %v1035
    %1207 = vmatmul.f32.gmra.mxu0 %v937
    %v1208 = vpop.f32.mrf.mxu0
    %v1209 = vadd.f32 %v1189, %v1208
    %1210 = vdwg.mxu0
    %1211 = vmatpush.msra.mxu0 %v1066
    %1212 = vmatpush.msra.mxu0 %v1065
    %1213 = vmatpush.msra.mxu0 %v1064
    %1214 = vmatpush.msra.mxu0 %v1063
    %1215 = vmatpush.msra.mxu0 %v1062
    %1216 = vmatpush.msra.mxu0 %v1061
    %1217 = vmatpush.msra.mxu0 %v1060
    %1218 = vmatpush.msra.mxu0 %v1059
    %1219 = vmatpush.msra.mxu0 %v1058
    %1220 = vmatpush.msra.mxu0 %v1057
    %1221 = vmatpush.msra.mxu0 %v1056
    %1222 = vmatpush.msra.mxu0 %v1055
    %1223 = vmatpush.msra.mxu0 %v1054
    %1224 = vmatpush.msra.mxu0 %v1053
    %1225 = vmatpush.msra.mxu0 %v1052
    %1226 = vmatpush.msra.mxu0 %v1051
    %1227 = vmatmul.f32.gmra.mxu0 %v938
    %v1228 = vpop.f32.mrf.mxu0
    %v1229 = vadd.f32 %v1209, %v1228
    %1230 = vdwg.mxu0
    %vm1231 = vcmask 50176
    %1232 = vst.msk [vmem:[#allocation2] sm:$0x3] %vm1231, %v1229
    // Predicated region
    $region30: #{pose_efficientnet_forward.3} parent=1 // pred_check
      _
    $region31: #{pose_efficientnet_forward.3} parent=1 // pred_check_branch
      %1234 = sbr.rel (0) target = $region33
    $region32: #{pose_efficientnet_forward.3} parent=1 // pred_region
      %1236 = vsyncadd [#allocation3], 0
      %s1238 = sshll.u32 [#allocation2], 4
      %s1239 = int_to_ptr.vmem [resolvable:$true] %s1238
      %s1240 = sshll.u32 %s7, 4
      %s1241 = int_to_ptr.hbm [resolvable:$true] %s1240
      %1243 = dma.vmem_to_hbm [thread:$0]  %s1239, 32, %s1241, [#allocation3]
    $region33: #{pose_efficientnet_forward.3} parent=1 // pred_fallthru
      _
    // Predicated region
    $region34: #{pose_efficientnet_forward.3} parent=1 // pred_check
      _
    $region35: #{pose_efficientnet_forward.3} parent=1 // pred_check_branch
      %1245 = sbr.rel (0) target = $region37
    $region36: #{pose_efficientnet_forward.3} parent=1 // pred_region
      %1247 = dma.done [#allocation3], 32
    $region37: #{pose_efficientnet_forward.3} parent=1 // pred_fallthru
      _
    %1248 = vsyncpa [#allocation3], 1

</llo_original>
